<compile_context>
chip_gen: v7x
topology: tpu7x:2x2x1
jax: 0.10.0
libtpu: 0.0.40
codegen_flags: <defaults>
</compile_context>

<pallas_src>
import jax
import jax.numpy as jnp
from jax import lax
from jax.experimental import pallas as pl
from jax.experimental.pallas import tpu as pltpu

NEG_SLOPE = 0.01  # F.leaky_relu default negative_slope


def feedforward_pallas(word_embed, prev_tag, tag_table, w1, b1, w2, b2=None,
                       slab_dtype=jnp.float32):
    """word_embed (B, Dw) f32, prev_tag (B,) i32, tag_table (T, Dt) f32.
    w1 (D, H) = fc1.weight.T with rows [word | prev_tag | all_tags],
    b1 (1, H), w2 (1, H) = fc2.weight, b2 unused (cancels in log_softmax).
    Returns (B, T) log-probabilities (matches torch `.t()` + log_softmax(dim=1)).

    slab_dtype=jnp.bfloat16 halves VPU work / vreg pressure on v6e/v7x for the
    (B, T, H) elementwise slab (reduction + softmax stay f32); default f32."""
    B, Dw = word_embed.shape
    T, Dt = tag_table.shape
    D, H = w1.shape
    assert D == Dw + 2 * Dt, "fc1 weight rows must be [word | prev_tag | all_tags]"

    # Batch tiling: one big tile when it fits, else 512-row tiles (sweet spot,
    # multiple of 8 for sublane tiling). "parallel" lets v7x shard over 2 TCs.
    TILE_B = B if B <= 512 else 512
    grid_b = pl.cdiv(B, TILE_B)

    hst = lax.Precision.HIGHEST

    def kernel(word_ref, prev_ref, tag_ref, w1_ref, b1_ref, w2_ref, o_ref):
        f32 = jnp.float32

        # Static row-slices of the fc1 weight (sublane-aligned when Dw, Dt are
        # multiples of 8; otherwise Mosaic inserts a tiny copy).
        w1_word = w1_ref[0:Dw, :]          # (Dw, H)
        w1_prev = w1_ref[Dw:Dw + Dt, :]    # (Dt, H)
        w1_all = w1_ref[Dw + Dt:D, :]      # (Dt, H)

        tag = tag_ref[...]                 # (T, Dt)

        # Tag-dependent halves of fc1, computed in-kernel on the MXU
        # (T x H each -> trivially cheap; removes the wrapper-side matmul
        #  dispatch + HBM round trip of the old h_tag precompute).
        hp = jnp.dot(tag, w1_prev, preferred_element_type=f32, precision=hst)   # (T, H)
        ht = jnp.dot(tag, w1_all, preferred_element_type=f32, precision=hst) \
            + b1_ref[...]                                                        # (T, H)

        # Fused embedding gather:  one_hot(prev_tag) @ hp  ==  hp[prev_tag]
        prev = prev_ref[...]               # (TILE_B, 1) int32
        onehot = (lax.broadcasted_iota(jnp.int32, (TILE_B, T), 1) == prev
                  ).astype(f32)            # (TILE_B, T)

        # fc1 base term for the whole tile: two small MXU matmuls, f32 acc.
        h_base = (jnp.dot(word_ref[...], w1_word,
                          preferred_element_type=f32, precision=hst)
                  + jnp.dot(onehot, hp,
                            preferred_element_type=f32, precision=hst))          # (TILE_B, H)

        # Low-rank broadcast-add reconstructs the full fc1 output without ever
        # materializing the (B, T, D) concatenated input.
        cdt = slab_dtype
        h = h_base.astype(cdt)[:, None, :] + ht.astype(cdt)[None, :, :]          # (TILE_B, T, H)

        # leaky_relu as a single vmax (valid since 0 < NEG_SLOPE < 1).
        h = jnp.maximum(h, NEG_SLOPE * h)

        # TODO(synk): dropout(p=0.25) is identity in eval mode; training-mode
        # masking would use pltpu.prng_seed / pltpu.prng_random_bits here.

        # fc2 as a VPU multiply + lane reduction in f32.
        # (On v5e at large B this could move to the MXU via
        #  h.reshape(B*T, H) @ w2.T; kept on the VPU here for portability.)
        s = jnp.sum((h * w2_ref[...].astype(cdt)[None, :, :]).astype(f32),
                    axis=-1)                                                      # (TILE_B, T)
        # fc2 bias b2 omitted: constant per logit, cancels in log_softmax.

        # log_softmax over tags (lane reduction on the last axis).
        m = jnp.max(s, axis=-1, keepdims=True)
        z = s - m
        lse = jnp.log(jnp.sum(jnp.exp(z), axis=-1, keepdims=True))
        o_ref[...] = (z - lse).astype(o_ref.dtype)

    # metadata-only reshape so prev_tag rides along as a (B, 1) VMEM operand
    prev2d = prev_tag.astype(jnp.int32).reshape(B, 1)

    out = pl.pallas_call(
        kernel,
        out_shape=jax.ShapeDtypeStruct((B, T), jnp.float32),
        grid=(grid_b,),
        in_specs=[
            pl.BlockSpec((TILE_B, Dw), lambda i: (i, 0)),   # word_embed tile
            pl.BlockSpec((TILE_B, 1), lambda i: (i, 0)),    # prev_tag tile
            pl.BlockSpec((T, Dt), lambda i: (0, 0)),        # tag table (resident)
            pl.BlockSpec((D, H), lambda i: (0, 0)),         # fc1 weight (resident)
            pl.BlockSpec((1, H), lambda i: (0, 0)),         # fc1 bias   (resident)
            pl.BlockSpec((1, H), lambda i: (0, 0)),         # fc2 weight (resident)
        ],
        # NOTE: output is (TILE_B, T) with T=16 lanes; lane-sparse but tiny.
        # If B reaches tens of thousands, emit (T, B) for lane-dense stores.
        out_specs=pl.BlockSpec((TILE_B, T), lambda i: (i, 0)),
        compiler_params=pltpu.CompilerParams(
            dimension_semantics=("parallel",),
            vmem_limit_bytes=32 * 1024 * 1024),
    )(word_embed.astype(jnp.float32), prev2d, tag_table.astype(jnp.float32),
      w1, b1, w2)
    return out


def feedforward_reference(word_embed, prev_tag, tag_table, w1, b1, w2, b2):
    """Pure-JAX reference mirroring the PyTorch forward (eval mode)."""
    B = word_embed.shape[0]
    T = tag_table.shape[0]
    tag_prev = tag_table[prev_tag]
    base = jnp.concatenate([word_embed, tag_prev], axis=1)
    base_b = jnp.broadcast_to(base[:, None, :], (B, T, base.shape[1]))
    all_emb = jnp.broadcast_to(tag_table[None, :, :], (B, T, tag_table.shape[1]))
    x = jnp.concatenate([base_b, all_emb], axis=-1).reshape(B * T, -1)
    h = jnp.dot(x, w1, precision=lax.Precision.HIGHEST) + b1
    h = jnp.where(h > 0, h, NEG_SLOPE * h)
    s = jnp.dot(h, w2.T, precision=lax.Precision.HIGHEST) + b2[0, 0]  # (B*T, 1)
    s = s.reshape(B, T)
    return jax.nn.log_softmax(s, axis=-1)


if __name__ == "__main__":
    # small shapes consistent with the module (H chosen lane-dense = 128)
    B, n_tags, tag_dim, word_dim, hidden_dim = 4, 16, 8, 16, 128
    D = word_dim + 2 * tag_dim

    key = jax.random.PRNGKey(0)
    k_tab, k_word, k_tag, k_w1, k_b1, k_w2, k_b2 = jax.random.split(key, 7)

    # deterministic synthetic parameters (shapes from the module's __init__)
    tag_table = jax.random.normal(k_tab, (n_tags, tag_dim), jnp.float32) * 0.5
    w1 = jax.random.normal(k_w1, (D, hidden_dim), jnp.float32) * 0.1   # fc1.weight.T
    b1 = jax.random.normal(k_b1, (1, hidden_dim), jnp.float32) * 0.1   # fc1.bias
    w2 = jax.random.normal(k_w2, (1, hidden_dim), jnp.float32) * 0.1   # fc2.weight
    b2 = jax.random.normal(k_b2, (1, 1), jnp.float32) * 0.1            # fc2.bias

    # deterministic example inputs
    word_embed = jax.random.normal(k_word, (B, word_dim), jnp.float32)
    prev_tag = jax.random.randint(k_tag, (B,), 0, n_tags, jnp.int32)

    out = feedforward_pallas(word_embed, prev_tag, tag_table, w1, b1, w2, b2)
    out = jax.block_until_ready(out)

    ref = feedforward_reference(word_embed, prev_tag, tag_table, w1, b1, w2, b2)
    assert out.shape == (B, n_tags)
    assert jnp.allclose(out, ref, atol=1e-3, rtol=1e-3), (
        f"max abs diff {jnp.max(jnp.abs(out - ref))}")

    print("KERNEL_OK")
</pallas_src>

<mosaic_0001>
module attributes {stable_mosaic.version = 11 : i64} {
  func.func @kernel(%arg0: i32, %arg1: memref<4x16xf32, #tpu.memory_space<vmem>>, %arg2: memref<4x1xi32, #tpu.memory_space<vmem>>, %arg3: memref<16x8xf32, #tpu.memory_space<vmem>>, %arg4: memref<32x128xf32, #tpu.memory_space<vmem>>, %arg5: memref<1x128xf32, #tpu.memory_space<vmem>>, %arg6: memref<1x128xf32, #tpu.memory_space<vmem>>, %arg7: memref<4x16xf32, #tpu.memory_space<vmem>>) attributes {dimension_semantics = [#tpu.dimension_semantics<parallel>], iteration_bounds = array<i64: 1>, scalar_prefetch = 0 : i64, scratch_operands = 0 : i64, tpu.core_type = #tpu.core_type<tc>, window_params = [{transform_indices = @transform_0, window_bounds = array<i64: 4, 16>}, {transform_indices = @transform_1, window_bounds = array<i64: 4, 1>}, {pipeline_mode = #tpu.pipeline_mode<synchronous>, transform_indices = @transform_2, window_bounds = array<i64: 16, 8>}, {pipeline_mode = #tpu.pipeline_mode<synchronous>, transform_indices = @transform_3, window_bounds = array<i64: 32, 128>}, {pipeline_mode = #tpu.pipeline_mode<synchronous>, transform_indices = @transform_4, window_bounds = array<i64: 1, 128>}, {pipeline_mode = #tpu.pipeline_mode<synchronous>, transform_indices = @transform_5, window_bounds = array<i64: 1, 128>}, {transform_indices = @transform_6, window_bounds = array<i64: 4, 16>}]} {
    %c0 = arith.constant 0 : index
    %c0_0 = arith.constant 0 : index
    %0 = vector.load %arg4[%c0, %c0_0] : memref<32x128xf32, #tpu.memory_space<vmem>>, vector<16x128xf32>
    %c16 = arith.constant 16 : index
    %c0_1 = arith.constant 0 : index
    %1 = vector.load %arg4[%c16, %c0_1] : memref<32x128xf32, #tpu.memory_space<vmem>>, vector<8x128xf32>
    %c24 = arith.constant 24 : index
    %c0_2 = arith.constant 0 : index
    %2 = vector.load %arg4[%c24, %c0_2] : memref<32x128xf32, #tpu.memory_space<vmem>>, vector<8x128xf32>
    %c0_3 = arith.constant 0 : index
    %c0_4 = arith.constant 0 : index
    %3 = vector.load %arg3[%c0_3, %c0_4] : memref<16x8xf32, #tpu.memory_space<vmem>>, vector<16x8xf32>
    %cst = arith.constant dense<0.000000e+00> : vector<16x128xf32>
    %4 = tpu.matmul %3, %1, %cst {dimension_numbers = #tpu.dot_dimension_numbers<[1], [0], [0], [1], [0, 0, 1, 1], [], []>, precision = #tpu.contract_precision<fp32>} : vector<16x8xf32>, vector<8x128xf32>, vector<16x128xf32> -> vector<16x128xf32>
    %cst_5 = arith.constant dense<0.000000e+00> : vector<16x128xf32>
    %5 = tpu.matmul %3, %2, %cst_5 {dimension_numbers = #tpu.dot_dimension_numbers<[1], [0], [0], [1], [0, 0, 1, 1], [], []>, precision = #tpu.contract_precision<fp32>} : vector<16x8xf32>, vector<8x128xf32>, vector<16x128xf32> -> vector<16x128xf32>
    %c0_6 = arith.constant 0 : index
    %c0_7 = arith.constant 0 : index
    %6 = vector.load %arg5[%c0_6, %c0_7] : memref<1x128xf32, #tpu.memory_space<vmem>>, vector<1x128xf32>
    %7 = vector.broadcast %6 : vector<1x128xf32> to vector<16x128xf32>
    %8 = arith.addf %5, %7 : vector<16x128xf32>
    %c0_8 = arith.constant 0 : index
    %c0_9 = arith.constant 0 : index
    %9 = vector.load %arg2[%c0_8, %c0_9] : memref<4x1xi32, #tpu.memory_space<vmem>>, vector<4x1xi32>
    %10 = tpu.iota {dimensions = array<i32: 1>} : vector<4x16xi32>
    %11 = vector.broadcast %9 : vector<4x1xi32> to vector<4x16xi32>
    %12 = arith.cmpi eq, %10, %11 : vector<4x16xi32>
    %13 = arith.extui %12 : vector<4x16xi1> to vector<4x16xi32>
    %14 = arith.sitofp %13 : vector<4x16xi32> to vector<4x16xf32>
    %c0_10 = arith.constant 0 : index
    %c0_11 = arith.constant 0 : index
    %15 = vector.load %arg1[%c0_10, %c0_11] : memref<4x16xf32, #tpu.memory_space<vmem>>, vector<4x16xf32>
    %cst_12 = arith.constant dense<0.000000e+00> : vector<4x128xf32>
    %16 = tpu.matmul %15, %0, %cst_12 {dimension_numbers = #tpu.dot_dimension_numbers<[1], [0], [0], [1], [0, 0, 1, 1], [], []>, precision = #tpu.contract_precision<fp32>} : vector<4x16xf32>, vector<16x128xf32>, vector<4x128xf32> -> vector<4x128xf32>
    %cst_13 = arith.constant dense<0.000000e+00> : vector<4x128xf32>
    %17 = tpu.matmul %14, %4, %cst_13 {dimension_numbers = #tpu.dot_dimension_numbers<[1], [0], [0], [1], [0, 0, 1, 1], [], []>, precision = #tpu.contract_precision<fp32>} : vector<4x16xf32>, vector<16x128xf32>, vector<4x128xf32> -> vector<4x128xf32>
    %18 = arith.addf %16, %17 : vector<4x128xf32>
    %19 = vector.shape_cast %18 : vector<4x128xf32> to vector<4x1x128xf32>
    %20 = vector.shape_cast %8 : vector<16x128xf32> to vector<1x16x128xf32>
    %21 = vector.broadcast %19 : vector<4x1x128xf32> to vector<4x16x128xf32>
    %22 = vector.broadcast %20 : vector<1x16x128xf32> to vector<4x16x128xf32>
    %23 = arith.addf %21, %22 : vector<4x16x128xf32>
    %cst_14 = arith.constant 0.00999999977 : f32
    %24 = vector.broadcast %cst_14 : f32 to vector<4x16x128xf32>
    %25 = arith.mulf %24, %23 : vector<4x16x128xf32>
    %26 = arith.maximumf %23, %25 : vector<4x16x128xf32>
    %c0_15 = arith.constant 0 : index
    %c0_16 = arith.constant 0 : index
    %27 = vector.load %arg6[%c0_15, %c0_16] : memref<1x128xf32, #tpu.memory_space<vmem>>, vector<1x128xf32>
    %28 = vector.shape_cast %27 : vector<1x128xf32> to vector<1x1x128xf32>
    %29 = vector.broadcast %28 : vector<1x1x128xf32> to vector<4x16x128xf32>
    %30 = arith.mulf %26, %29 : vector<4x16x128xf32>
    %cst_17 = arith.constant dense<0.000000e+00> : vector<4x16xf32>
    %31 = vector.multi_reduction <add>, %30, %cst_17 [2] : vector<4x16x128xf32> to vector<4x16xf32>
    %cst_18 = arith.constant dense<0xFF800000> : vector<4xf32>
    %32 = vector.multi_reduction <maximumf>, %31, %cst_18 [1] : vector<4x16xf32> to vector<4xf32>
    %33 = vector.shape_cast %32 : vector<4xf32> to vector<4x1xf32>
    %34 = vector.broadcast %33 : vector<4x1xf32> to vector<4x16xf32>
    %35 = arith.subf %31, %34 : vector<4x16xf32>
    %36 = math.exp %35 : vector<4x16xf32>
    %cst_19 = arith.constant dense<0.000000e+00> : vector<4xf32>
    %37 = vector.multi_reduction <add>, %36, %cst_19 [1] : vector<4x16xf32> to vector<4xf32>
    %38 = vector.shape_cast %37 : vector<4xf32> to vector<4x1xf32>
    %39 = math.log %38 : vector<4x1xf32>
    %40 = vector.broadcast %39 : vector<4x1xf32> to vector<4x16xf32>
    %41 = arith.subf %35, %40 : vector<4x16xf32>
    %c0_20 = arith.constant 0 : index
    %c0_21 = arith.constant 0 : index
    %42 = vector.load %arg7[%c0_20, %c0_21] : memref<4x16xf32, #tpu.memory_space<vmem>>, vector<4x16xf32>
    tpu.vector_store %arg7[%c0_20, %c0_21], %41 {strides = array<i32>} : memref<4x16xf32, #tpu.memory_space<vmem>>, vector<4x16xf32>,
    return
  }
  func.func @transform_0(%arg0: i32) -> (i32, i32) {
    %c0_i32 = arith.constant 0 : i32
    %c0_i32_0 = arith.constant 0 : i32
    return %arg0, %c0_i32 : i32, i32
  }
  func.func @transform_1(%arg0: i32) -> (i32, i32) {
    %c0_i32 = arith.constant 0 : i32
    %c0_i32_0 = arith.constant 0 : i32
    return %arg0, %c0_i32 : i32, i32
  }
  func.func @transform_2(%arg0: i32) -> (i32, i32) {
    %c0_i32 = arith.constant 0 : i32
    %c0_i32_0 = arith.constant 0 : i32
    %c0_i32_1 = arith.constant 0 : i32
    return %c0_i32, %c0_i32_0 : i32, i32
  }
  func.func @transform_3(%arg0: i32) -> (i32, i32) {
    %c0_i32 = arith.constant 0 : i32
    %c0_i32_0 = arith.constant 0 : i32
    %c0_i32_1 = arith.constant 0 : i32
    return %c0_i32, %c0_i32_0 : i32, i32
  }
  func.func @transform_4(%arg0: i32) -> (i32, i32) {
    %c0_i32 = arith.constant 0 : i32
    %c0_i32_0 = arith.constant 0 : i32
    %c0_i32_1 = arith.constant 0 : i32
    return %c0_i32, %c0_i32_0 : i32, i32
  }
  func.func @transform_5(%arg0: i32) -> (i32, i32) {
    %c0_i32 = arith.constant 0 : i32
    %c0_i32_0 = arith.constant 0 : i32
    %c0_i32_1 = arith.constant 0 : i32
    return %c0_i32, %c0_i32_0 : i32, i32
  }
  func.func @transform_6(%arg0: i32) -> (i32, i32) {
    %c0_i32 = arith.constant 0 : i32
    %c0_i32_0 = arith.constant 0 : i32
    return %arg0, %c0_i32 : i32, i32
  }
}

</mosaic_0001>

<llo_original>
// kernel: tpu_custom_call.1
$region0: #{tpu_custom_call.1}
  #allocation0 [shape = 'u32[]', space=smem, size = 0x4, offset = 0x4, fixed_abs, tag = 'smem constant byte address 0x4 - core index']
  #allocation1 [shape = 'u32[144,128]{1,0:T(1,128)}', space=vmem, size = 0x12000, scoped, tag = 'internal scratch']
  %s0 = inlined_call_operand.vmem [shape: f32[4,16], index: 0, kind: input, shape index: {}]
  %s1 = inlined_call_operand.vmem [shape: s32[4,1], index: 1, kind: input, shape index: {}]
  %s2 = inlined_call_operand.vmem [shape: f32[16,8], index: 2, kind: input, shape index: {}]
  %s3 = inlined_call_operand.vmem [shape: f32[32,128], index: 3, kind: input, shape index: {}]
  %s4 = inlined_call_operand.vmem [shape: f32[1,128], index: 4, kind: input, shape index: {}]
  %s5 = inlined_call_operand.vmem [shape: f32[1,128], index: 5, kind: input, shape index: {}]
  %s6 = inlined_call_operand.hbm [shape: f32[4,16], index: 6, kind: output, shape index: {}]
  %s7 = sld [smem:[#allocation0]]
  $region34: #{tpu_custom_call.1} parent=0
    _
  %s9 = ssub.s32 1, %s7
  %s10 = scalar_select 0, %s9, %s7
  $region1: #{tpu_custom_call.1} parent=0
    #allocation2 [shape = 'u8[2048]{0}', space=vmem, size = 0x800, scoped, tag = 'output window, operand 0, single buffered']
    #allocation3 [shape = 's32[1]{0}', space=sflag, size = 0x4, scoped, tag = 'scoped memory for tpu_custom_call.1']
    %11 = vsyncpa [#allocation3], 0
    // Predicated region
    $region2: #{tpu_custom_call.1} parent=1 // pred_check
      _
    $region3: #{tpu_custom_call.1} parent=1 // pred_check_branch
      %13 = sbr.rel (0) target = $region5
    $region4: #{tpu_custom_call.1} parent=1 // pred_region
      _
    $region5: #{tpu_custom_call.1} parent=1 // pred_fallthru
      _
    // Predicated region
    $region6: #{tpu_custom_call.1} parent=1 // pred_check
      _
    $region7: #{tpu_custom_call.1} parent=1 // pred_check_branch
      %15 = sbr.rel (0) target = $region9
    $region8: #{tpu_custom_call.1} parent=1 // pred_region
      _
    $region9: #{tpu_custom_call.1} parent=1 // pred_fallthru
      _
    // Predicated region
    $region10: #{tpu_custom_call.1} parent=1 // pred_check
      _
    $region11: #{tpu_custom_call.1} parent=1 // pred_check_branch
      %17 = sbr.rel (0) target = $region13
    $region12: #{tpu_custom_call.1} parent=1 // pred_region
      _
    $region13: #{tpu_custom_call.1} parent=1 // pred_fallthru
      _
    // Predicated region
    $region14: #{tpu_custom_call.1} parent=1 // pred_check
      _
    $region15: #{tpu_custom_call.1} parent=1 // pred_check_branch
      %19 = sbr.rel (0) target = $region17
    $region16: #{tpu_custom_call.1} parent=1 // pred_region
      _
    $region17: #{tpu_custom_call.1} parent=1 // pred_fallthru
      _
    // Predicated region
    $region18: #{tpu_custom_call.1} parent=1 // pred_check
      _
    $region19: #{tpu_custom_call.1} parent=1 // pred_check_branch
      %21 = sbr.rel (0) target = $region21
    $region20: #{tpu_custom_call.1} parent=1 // pred_region
      _
    $region21: #{tpu_custom_call.1} parent=1 // pred_fallthru
      _
    // Predicated region
    $region22: #{tpu_custom_call.1} parent=1 // pred_check
      _
    $region23: #{tpu_custom_call.1} parent=1 // pred_check_branch
      %23 = sbr.rel (0) target = $region25
    $region24: #{tpu_custom_call.1} parent=1 // pred_region
      _
    $region25: #{tpu_custom_call.1} parent=1 // pred_fallthru
      _
    %v24 = vld [vmem:[%s3] sm:$0xff]
    %v25 = vld [vmem:[%s3 + $0x8] sm:$0xff]
    %v26 = vld [vmem:[%s3 + $0x10] sm:$0xff]
    %v27 = vld [vmem:[%s3 + $0x18] sm:$0xff]
    %v28 = vld [vmem:[%s2] sm:$0xff]
    %v29 = vld [vmem:[%s2 + $0x8] sm:$0xff]
    %vm30 = vcmask 64512
    %v32 = vsel %vm30, %v28, 0
    %v35 = vsel %vm30, %v29, 0
    %37 = vmatprep.subr.mxu0 0.0
    %v38 = vand.u32 %v26, 4294901760
    %39 = vmatpush1.msra.mxu0 %v38
    %40 = vmatprep.subr.mxu0 0.0
    %41 = vmatpush1.msra.mxu0 0.0
    %42 = vmatprep.subr.mxu0 0.0
    %43 = vmatpush1.msra.mxu0 0.0
    %44 = vmatprep.subr.mxu0 0.0
    %45 = vmatpush1.msra.mxu0 0.0
    %46 = vmatprep.subr.mxu0 0.0
    %47 = vmatpush1.msra.mxu0 0.0
    %48 = vmatprep.subr.mxu0 0.0
    %49 = vmatpush1.msra.mxu0 0.0
    %50 = vmatprep.subr.mxu0 0.0
    %51 = vmatpush1.msra.mxu0 0.0
    %52 = vmatprep.subr.mxu0 0.0
    %53 = vmatpush1.msra.mxu0 0.0
    %54 = vmatprep.subr.mxu0 0.0
    %55 = vmatpush1.msra.mxu0 0.0
    %56 = vmatprep.subr.mxu0 0.0
    %57 = vmatpush1.msra.mxu0 0.0
    %58 = vmatprep.subr.mxu0 0.0
    %59 = vmatpush1.msra.mxu0 0.0
    %60 = vmatprep.subr.mxu0 0.0
    %61 = vmatpush1.msra.mxu0 0.0
    %62 = vmatprep.subr.mxu0 0.0
    %63 = vmatpush1.msra.mxu0 0.0
    %64 = vmatprep.subr.mxu0 0.0
    %65 = vmatpush1.msra.mxu0 0.0
    %66 = vmatprep.subr.mxu0 0.0
    %67 = vmatpush1.msra.mxu0 0.0
    %68 = vmatprep.subr.mxu0 0.0
    %69 = vmatpush1.msra.mxu0 0.0
    %70 = vmatprep.subr.mxu0 0.0
    %71 = vmatpush1.msra.mxu0 0.0
    %72 = vmatprep.subr.mxu0 0.0
    %73 = vmatpush1.msra.mxu0 0.0
    %74 = vmatprep.subr.mxu0 0.0
    %75 = vmatpush1.msra.mxu0 0.0
    %76 = vmatprep.subr.mxu0 0.0
    %77 = vmatpush1.msra.mxu0 0.0
    %78 = vmatprep.subr.mxu0 0.0
    %79 = vmatpush1.msra.mxu0 0.0
    %80 = vmatprep.subr.mxu0 0.0
    %81 = vmatpush1.msra.mxu0 0.0
    %82 = vmatprep.subr.mxu0 0.0
    %83 = vmatpush1.msra.mxu0 0.0
    %84 = vmatprep.subr.mxu0 0.0
    %85 = vmatpush1.msra.mxu0 0.0
    %86 = vmatprep.subr.mxu0 0.0
    %87 = vmatpush1.msra.mxu0 0.0
    %88 = vmatprep.subr.mxu0 0.0
    %89 = vmatpush1.msra.mxu0 0.0
    %90 = vmatprep.subr.mxu0 0.0
    %91 = vmatpush1.msra.mxu0 0.0
    %92 = vmatprep.subr.mxu0 0.0
    %93 = vmatpush1.msra.mxu0 0.0
    %94 = vmatprep.subr.mxu0 0.0
    %95 = vmatpush1.msra.mxu0 0.0
    %96 = vmatprep.subr.mxu0 0.0
    %97 = vmatpush1.msra.mxu0 0.0
    %98 = vmatprep.subr.mxu0 0.0
    %99 = vmatpush1.msra.mxu0 0.0
    %100 = vmatprep.subr.mxu0 0.0
    %101 = vmatpush1.msra.mxu0 0.0
    %102 = vmatprep.mubr.f32.mxu0 0.0
    %v103 = vand.u32 %v32, 4294901760
    %v104 = vsub.f32 %v32, %v103
    %v105 = vand.u32 %v104, 4294901760
    %v106 = vsub.f32 %v104, %v105
    %v107 = vand.u32 %v106, 4294901760
    %108 = vmatmul.mubr.f32.gmra.mrb[0].mxu0 %v107
    %v109 = vpop.f32.mrb[0].mxu0
    %v110 = vadd.f32 0.0, %v109
    %v111 = vpop.f32.mrb[0].mxu0
    %112 = vmatprep.mubr.f32.mxu0 0.0
    %v113 = vand.u32 %v35, 4294901760
    %v114 = vsub.f32 %v35, %v113
    %v115 = vand.u32 %v114, 4294901760
    %v116 = vsub.f32 %v114, %v115
    %v117 = vand.u32 %v116, 4294901760
    %118 = vmatmul.mubr.f32.gmra.mrb[0].mxu0 %v117
    %v119 = vpop.f32.mrb[0].mxu0
    %v120 = vadd.f32 0.0, %v119
    %v121 = vpop.f32.mrb[0].mxu0
    %122 = vdwg.mxu0
    %123 = vmatprep.subr.mxu0 0.0
    %v124 = vand.u32 %v26, 4294901760
    %v125 = vsub.f32 %v26, %v124
    %v126 = vand.u32 %v125, 4294901760
    %v127 = vsub.f32 %v125, %v126
    %v128 = vand.u32 %v127, 4294901760
    %129 = vmatpush1.msra.mxu0 %v128
    %130 = vmatprep.subr.mxu0 0.0
    %131 = vmatpush1.msra.mxu0 0.0
    %132 = vmatprep.subr.mxu0 0.0
    %133 = vmatpush1.msra.mxu0 0.0
    %134 = vmatprep.subr.mxu0 0.0
    %135 = vmatpush1.msra.mxu0 0.0
    %136 = vmatprep.subr.mxu0 0.0
    %137 = vmatpush1.msra.mxu0 0.0
    %138 = vmatprep.subr.mxu0 0.0
    %139 = vmatpush1.msra.mxu0 0.0
    %140 = vmatprep.subr.mxu0 0.0
    %141 = vmatpush1.msra.mxu0 0.0
    %142 = vmatprep.subr.mxu0 0.0
    %143 = vmatpush1.msra.mxu0 0.0
    %144 = vmatprep.subr.mxu0 0.0
    %145 = vmatpush1.msra.mxu0 0.0
    %146 = vmatprep.subr.mxu0 0.0
    %147 = vmatpush1.msra.mxu0 0.0
    %148 = vmatprep.subr.mxu0 0.0
    %149 = vmatpush1.msra.mxu0 0.0
    %150 = vmatprep.subr.mxu0 0.0
    %151 = vmatpush1.msra.mxu0 0.0
    %152 = vmatprep.subr.mxu0 0.0
    %153 = vmatpush1.msra.mxu0 0.0
    %154 = vmatprep.subr.mxu0 0.0
    %155 = vmatpush1.msra.mxu0 0.0
    %156 = vmatprep.subr.mxu0 0.0
    %157 = vmatpush1.msra.mxu0 0.0
    %158 = vmatprep.subr.mxu0 0.0
    %159 = vmatpush1.msra.mxu0 0.0
    %160 = vmatprep.subr.mxu0 0.0
    %161 = vmatpush1.msra.mxu0 0.0
    %162 = vmatprep.subr.mxu0 0.0
    %163 = vmatpush1.msra.mxu0 0.0
    %164 = vmatprep.subr.mxu0 0.0
    %165 = vmatpush1.msra.mxu0 0.0
    %166 = vmatprep.subr.mxu0 0.0
    %167 = vmatpush1.msra.mxu0 0.0
    %168 = vmatprep.subr.mxu0 0.0
    %169 = vmatpush1.msra.mxu0 0.0
    %170 = vmatprep.subr.mxu0 0.0
    %171 = vmatpush1.msra.mxu0 0.0
    %172 = vmatprep.subr.mxu0 0.0
    %173 = vmatpush1.msra.mxu0 0.0
    %174 = vmatprep.subr.mxu0 0.0
    %175 = vmatpush1.msra.mxu0 0.0
    %176 = vmatprep.subr.mxu0 0.0
    %177 = vmatpush1.msra.mxu0 0.0
    %178 = vmatprep.subr.mxu0 0.0
    %179 = vmatpush1.msra.mxu0 0.0
    %180 = vmatprep.subr.mxu0 0.0
    %181 = vmatpush1.msra.mxu0 0.0
    %182 = vmatprep.subr.mxu0 0.0
    %183 = vmatpush1.msra.mxu0 0.0
    %184 = vmatprep.subr.mxu0 0.0
    %185 = vmatpush1.msra.mxu0 0.0
    %186 = vmatprep.subr.mxu0 0.0
    %187 = vmatpush1.msra.mxu0 0.0
    %188 = vmatprep.subr.mxu0 0.0
    %189 = vmatpush1.msra.mxu0 0.0
    %190 = vmatprep.subr.mxu0 0.0
    %191 = vmatpush1.msra.mxu0 0.0
    %192 = vmatprep.mubr.f32.mxu0 0.0
    %v193 = vand.u32 %v32, 4294901760
    %194 = vmatmul.mubr.f32.gmra.mrb[0].mxu0 %v193
    %v195 = vpop.f32.mrb[0].mxu0
    %v196 = vadd.f32 %v110, %v195
    %v197 = vpop.f32.mrb[0].mxu0
    %198 = vmatprep.mubr.f32.mxu0 0.0
    %v199 = vand.u32 %v35, 4294901760
    %200 = vmatmul.mubr.f32.gmra.mrb[0].mxu0 %v199
    %v201 = vpop.f32.mrb[0].mxu0
    %v202 = vadd.f32 %v120, %v201
    %v203 = vpop.f32.mrb[0].mxu0
    %204 = vdwg.mxu0
    %205 = vmatprep.subr.mxu0 0.0
    %v206 = vand.u32 %v26, 4294901760
    %v207 = vsub.f32 %v26, %v206
    %208 = vmatpush1.msra.mxu0 %v207
    %209 = vmatprep.subr.mxu0 0.0
    %210 = vmatpush1.msra.mxu0 0.0
    %211 = vmatprep.subr.mxu0 0.0
    %212 = vmatpush1.msra.mxu0 0.0
    %213 = vmatprep.subr.mxu0 0.0
    %214 = vmatpush1.msra.mxu0 0.0
    %215 = vmatprep.subr.mxu0 0.0
    %216 = vmatpush1.msra.mxu0 0.0
    %217 = vmatprep.subr.mxu0 0.0
    %218 = vmatpush1.msra.mxu0 0.0
    %219 = vmatprep.subr.mxu0 0.0
    %220 = vmatpush1.msra.mxu0 0.0
    %221 = vmatprep.subr.mxu0 0.0
    %222 = vmatpush1.msra.mxu0 0.0
    %223 = vmatprep.subr.mxu0 0.0
    %224 = vmatpush1.msra.mxu0 0.0
    %225 = vmatprep.subr.mxu0 0.0
    %226 = vmatpush1.msra.mxu0 0.0
    %227 = vmatprep.subr.mxu0 0.0
    %228 = vmatpush1.msra.mxu0 0.0
    %229 = vmatprep.subr.mxu0 0.0
    %230 = vmatpush1.msra.mxu0 0.0
    %231 = vmatprep.subr.mxu0 0.0
    %232 = vmatpush1.msra.mxu0 0.0
    %233 = vmatprep.subr.mxu0 0.0
    %234 = vmatpush1.msra.mxu0 0.0
    %235 = vmatprep.subr.mxu0 0.0
    %236 = vmatpush1.msra.mxu0 0.0
    %237 = vmatprep.subr.mxu0 0.0
    %238 = vmatpush1.msra.mxu0 0.0
    %239 = vmatprep.subr.mxu0 0.0
    %240 = vmatpush1.msra.mxu0 0.0
    %241 = vmatprep.subr.mxu0 0.0
    %242 = vmatpush1.msra.mxu0 0.0
    %243 = vmatprep.subr.mxu0 0.0
    %244 = vmatpush1.msra.mxu0 0.0
    %245 = vmatprep.subr.mxu0 0.0
    %246 = vmatpush1.msra.mxu0 0.0
    %247 = vmatprep.subr.mxu0 0.0
    %248 = vmatpush1.msra.mxu0 0.0
    %249 = vmatprep.subr.mxu0 0.0
    %250 = vmatpush1.msra.mxu0 0.0
    %251 = vmatprep.subr.mxu0 0.0
    %252 = vmatpush1.msra.mxu0 0.0
    %253 = vmatprep.subr.mxu0 0.0
    %254 = vmatpush1.msra.mxu0 0.0
    %255 = vmatprep.subr.mxu0 0.0
    %256 = vmatpush1.msra.mxu0 0.0
    %257 = vmatprep.subr.mxu0 0.0
    %258 = vmatpush1.msra.mxu0 0.0
    %259 = vmatprep.subr.mxu0 0.0
    %260 = vmatpush1.msra.mxu0 0.0
    %261 = vmatprep.subr.mxu0 0.0
    %262 = vmatpush1.msra.mxu0 0.0
    %263 = vmatprep.subr.mxu0 0.0
    %264 = vmatpush1.msra.mxu0 0.0
    %265 = vmatprep.subr.mxu0 0.0
    %266 = vmatpush1.msra.mxu0 0.0
    %267 = vmatprep.subr.mxu0 0.0
    %268 = vmatpush1.msra.mxu0 0.0
    %269 = vmatprep.subr.mxu0 0.0
    %270 = vmatpush1.msra.mxu0 0.0
    %271 = vmatprep.mubr.f32.mxu0 0.0
    %v272 = vand.u32 %v32, 4294901760
    %v273 = vsub.f32 %v32, %v272
    %274 = vmatmul.mubr.f32.gmra.mrb[0].mxu0 %v273
    %v275 = vpop.f32.mrb[0].mxu0
    %v276 = vadd.f32 %v196, %v275
    %v277 = vpop.f32.mrb[0].mxu0
    %278 = vmatprep.mubr.f32.mxu0 0.0
    %v279 = vand.u32 %v35, 4294901760
    %v280 = vsub.f32 %v35, %v279
    %281 = vmatmul.mubr.f32.gmra.mrb[0].mxu0 %v280
    %v282 = vpop.f32.mrb[0].mxu0
    %v283 = vadd.f32 %v202, %v282
    %v284 = vpop.f32.mrb[0].mxu0
    %285 = vdwg.mxu0
    %286 = vmatprep.subr.mxu0 0.0
    %v287 = vand.u32 %v26, 4294901760
    %288 = vmatpush1.msra.mxu0 %v287
    %289 = vmatprep.subr.mxu0 0.0
    %290 = vmatpush1.msra.mxu0 0.0
    %291 = vmatprep.subr.mxu0 0.0
    %292 = vmatpush1.msra.mxu0 0.0
    %293 = vmatprep.subr.mxu0 0.0
    %294 = vmatpush1.msra.mxu0 0.0
    %295 = vmatprep.subr.mxu0 0.0
    %296 = vmatpush1.msra.mxu0 0.0
    %297 = vmatprep.subr.mxu0 0.0
    %298 = vmatpush1.msra.mxu0 0.0
    %299 = vmatprep.subr.mxu0 0.0
    %300 = vmatpush1.msra.mxu0 0.0
    %301 = vmatprep.subr.mxu0 0.0
    %302 = vmatpush1.msra.mxu0 0.0
    %303 = vmatprep.subr.mxu0 0.0
    %304 = vmatpush1.msra.mxu0 0.0
    %305 = vmatprep.subr.mxu0 0.0
    %306 = vmatpush1.msra.mxu0 0.0
    %307 = vmatprep.subr.mxu0 0.0
    %308 = vmatpush1.msra.mxu0 0.0
    %309 = vmatprep.subr.mxu0 0.0
    %310 = vmatpush1.msra.mxu0 0.0
    %311 = vmatprep.subr.mxu0 0.0
    %312 = vmatpush1.msra.mxu0 0.0
    %313 = vmatprep.subr.mxu0 0.0
    %314 = vmatpush1.msra.mxu0 0.0
    %315 = vmatprep.subr.mxu0 0.0
    %316 = vmatpush1.msra.mxu0 0.0
    %317 = vmatprep.subr.mxu0 0.0
    %318 = vmatpush1.msra.mxu0 0.0
    %319 = vmatprep.subr.mxu0 0.0
    %320 = vmatpush1.msra.mxu0 0.0
    %321 = vmatprep.subr.mxu0 0.0
    %322 = vmatpush1.msra.mxu0 0.0
    %323 = vmatprep.subr.mxu0 0.0
    %324 = vmatpush1.msra.mxu0 0.0
    %325 = vmatprep.subr.mxu0 0.0
    %326 = vmatpush1.msra.mxu0 0.0
    %327 = vmatprep.subr.mxu0 0.0
    %328 = vmatpush1.msra.mxu0 0.0
    %329 = vmatprep.subr.mxu0 0.0
    %330 = vmatpush1.msra.mxu0 0.0
    %331 = vmatprep.subr.mxu0 0.0
    %332 = vmatpush1.msra.mxu0 0.0
    %333 = vmatprep.subr.mxu0 0.0
    %334 = vmatpush1.msra.mxu0 0.0
    %335 = vmatprep.subr.mxu0 0.0
    %336 = vmatpush1.msra.mxu0 0.0
    %337 = vmatprep.subr.mxu0 0.0
    %338 = vmatpush1.msra.mxu0 0.0
    %339 = vmatprep.subr.mxu0 0.0
    %340 = vmatpush1.msra.mxu0 0.0
    %341 = vmatprep.subr.mxu0 0.0
    %342 = vmatpush1.msra.mxu0 0.0
    %343 = vmatprep.subr.mxu0 0.0
    %344 = vmatpush1.msra.mxu0 0.0
    %345 = vmatprep.subr.mxu0 0.0
    %346 = vmatpush1.msra.mxu0 0.0
    %347 = vmatprep.subr.mxu0 0.0
    %348 = vmatpush1.msra.mxu0 0.0
    %349 = vmatprep.subr.mxu0 0.0
    %350 = vmatpush1.msra.mxu0 0.0
    %351 = vmatprep.mubr.f32.mxu0 0.0
    %v352 = vand.u32 %v32, 4294901760
    %v353 = vsub.f32 %v32, %v352
    %v354 = vand.u32 %v353, 4294901760
    %355 = vmatmul.mubr.f32.gmra.mrb[0].mxu0 %v354
    %v356 = vpop.f32.mrb[0].mxu0
    %v357 = vadd.f32 %v276, %v356
    %v358 = vpop.f32.mrb[0].mxu0
    %359 = vmatprep.mubr.f32.mxu0 0.0
    %v360 = vand.u32 %v35, 4294901760
    %v361 = vsub.f32 %v35, %v360
    %v362 = vand.u32 %v361, 4294901760
    %363 = vmatmul.mubr.f32.gmra.mrb[0].mxu0 %v362
    %v364 = vpop.f32.mrb[0].mxu0
    %v365 = vadd.f32 %v283, %v364
    %v366 = vpop.f32.mrb[0].mxu0
    %367 = vdwg.mxu0
    %368 = vmatprep.subr.mxu0 0.0
    %v369 = vand.u32 %v26, 4294901760
    %v370 = vsub.f32 %v26, %v369
    %v371 = vand.u32 %v370, 4294901760
    %372 = vmatpush1.msra.mxu0 %v371
    %373 = vmatprep.subr.mxu0 0.0
    %374 = vmatpush1.msra.mxu0 0.0
    %375 = vmatprep.subr.mxu0 0.0
    %376 = vmatpush1.msra.mxu0 0.0
    %377 = vmatprep.subr.mxu0 0.0
    %378 = vmatpush1.msra.mxu0 0.0
    %379 = vmatprep.subr.mxu0 0.0
    %380 = vmatpush1.msra.mxu0 0.0
    %381 = vmatprep.subr.mxu0 0.0
    %382 = vmatpush1.msra.mxu0 0.0
    %383 = vmatprep.subr.mxu0 0.0
    %384 = vmatpush1.msra.mxu0 0.0
    %385 = vmatprep.subr.mxu0 0.0
    %386 = vmatpush1.msra.mxu0 0.0
    %387 = vmatprep.subr.mxu0 0.0
    %388 = vmatpush1.msra.mxu0 0.0
    %389 = vmatprep.subr.mxu0 0.0
    %390 = vmatpush1.msra.mxu0 0.0
    %391 = vmatprep.subr.mxu0 0.0
    %392 = vmatpush1.msra.mxu0 0.0
    %393 = vmatprep.subr.mxu0 0.0
    %394 = vmatpush1.msra.mxu0 0.0
    %395 = vmatprep.subr.mxu0 0.0
    %396 = vmatpush1.msra.mxu0 0.0
    %397 = vmatprep.subr.mxu0 0.0
    %398 = vmatpush1.msra.mxu0 0.0
    %399 = vmatprep.subr.mxu0 0.0
    %400 = vmatpush1.msra.mxu0 0.0
    %401 = vmatprep.subr.mxu0 0.0
    %402 = vmatpush1.msra.mxu0 0.0
    %403 = vmatprep.subr.mxu0 0.0
    %404 = vmatpush1.msra.mxu0 0.0
    %405 = vmatprep.subr.mxu0 0.0
    %406 = vmatpush1.msra.mxu0 0.0
    %407 = vmatprep.subr.mxu0 0.0
    %408 = vmatpush1.msra.mxu0 0.0
    %409 = vmatprep.subr.mxu0 0.0
    %410 = vmatpush1.msra.mxu0 0.0
    %411 = vmatprep.subr.mxu0 0.0
    %412 = vmatpush1.msra.mxu0 0.0
    %413 = vmatprep.subr.mxu0 0.0
    %414 = vmatpush1.msra.mxu0 0.0
    %415 = vmatprep.subr.mxu0 0.0
    %416 = vmatpush1.msra.mxu0 0.0
    %417 = vmatprep.subr.mxu0 0.0
    %418 = vmatpush1.msra.mxu0 0.0
    %419 = vmatprep.subr.mxu0 0.0
    %420 = vmatpush1.msra.mxu0 0.0
    %421 = vmatprep.subr.mxu0 0.0
    %422 = vmatpush1.msra.mxu0 0.0
    %423 = vmatprep.subr.mxu0 0.0
    %424 = vmatpush1.msra.mxu0 0.0
    %425 = vmatprep.subr.mxu0 0.0
    %426 = vmatpush1.msra.mxu0 0.0
    %427 = vmatprep.subr.mxu0 0.0
    %428 = vmatpush1.msra.mxu0 0.0
    %429 = vmatprep.subr.mxu0 0.0
    %430 = vmatpush1.msra.mxu0 0.0
    %431 = vmatprep.subr.mxu0 0.0
    %432 = vmatpush1.msra.mxu0 0.0
    %433 = vmatprep.subr.mxu0 0.0
    %434 = vmatpush1.msra.mxu0 0.0
    %435 = vmatprep.mubr.f32.mxu0 0.0
    %v436 = vand.u32 %v32, 4294901760
    %437 = vmatmul.mubr.f32.gmra.mrb[0].mxu0 %v436
    %v438 = vpop.f32.mrb[0].mxu0
    %v439 = vadd.f32 %v357, %v438
    %v440 = vpop.f32.mrb[0].mxu0
    %441 = vmatprep.mubr.f32.mxu0 0.0
    %v442 = vand.u32 %v35, 4294901760
    %443 = vmatmul.mubr.f32.gmra.mrb[0].mxu0 %v442
    %v444 = vpop.f32.mrb[0].mxu0
    %v445 = vadd.f32 %v365, %v444
    %v446 = vpop.f32.mrb[0].mxu0
    %447 = vdwg.mxu0
    %448 = vmatprep.subr.mxu0 0.0
    %v449 = vand.u32 %v26, 4294901760
    %450 = vmatpush1.msra.mxu0 %v449
    %451 = vmatprep.subr.mxu0 0.0
    %452 = vmatpush1.msra.mxu0 0.0
    %453 = vmatprep.subr.mxu0 0.0
    %454 = vmatpush1.msra.mxu0 0.0
    %455 = vmatprep.subr.mxu0 0.0
    %456 = vmatpush1.msra.mxu0 0.0
    %457 = vmatprep.subr.mxu0 0.0
    %458 = vmatpush1.msra.mxu0 0.0
    %459 = vmatprep.subr.mxu0 0.0
    %460 = vmatpush1.msra.mxu0 0.0
    %461 = vmatprep.subr.mxu0 0.0
    %462 = vmatpush1.msra.mxu0 0.0
    %463 = vmatprep.subr.mxu0 0.0
    %464 = vmatpush1.msra.mxu0 0.0
    %465 = vmatprep.subr.mxu0 0.0
    %466 = vmatpush1.msra.mxu0 0.0
    %467 = vmatprep.subr.mxu0 0.0
    %468 = vmatpush1.msra.mxu0 0.0
    %469 = vmatprep.subr.mxu0 0.0
    %470 = vmatpush1.msra.mxu0 0.0
    %471 = vmatprep.subr.mxu0 0.0
    %472 = vmatpush1.msra.mxu0 0.0
    %473 = vmatprep.subr.mxu0 0.0
    %474 = vmatpush1.msra.mxu0 0.0
    %475 = vmatprep.subr.mxu0 0.0
    %476 = vmatpush1.msra.mxu0 0.0
    %477 = vmatprep.subr.mxu0 0.0
    %478 = vmatpush1.msra.mxu0 0.0
    %479 = vmatprep.subr.mxu0 0.0
    %480 = vmatpush1.msra.mxu0 0.0
    %481 = vmatprep.subr.mxu0 0.0
    %482 = vmatpush1.msra.mxu0 0.0
    %483 = vmatprep.subr.mxu0 0.0
    %484 = vmatpush1.msra.mxu0 0.0
    %485 = vmatprep.subr.mxu0 0.0
    %486 = vmatpush1.msra.mxu0 0.0
    %487 = vmatprep.subr.mxu0 0.0
    %488 = vmatpush1.msra.mxu0 0.0
    %489 = vmatprep.subr.mxu0 0.0
    %490 = vmatpush1.msra.mxu0 0.0
    %491 = vmatprep.subr.mxu0 0.0
    %492 = vmatpush1.msra.mxu0 0.0
    %493 = vmatprep.subr.mxu0 0.0
    %494 = vmatpush1.msra.mxu0 0.0
    %495 = vmatprep.subr.mxu0 0.0
    %496 = vmatpush1.msra.mxu0 0.0
    %497 = vmatprep.subr.mxu0 0.0
    %498 = vmatpush1.msra.mxu0 0.0
    %499 = vmatprep.subr.mxu0 0.0
    %500 = vmatpush1.msra.mxu0 0.0
    %501 = vmatprep.subr.mxu0 0.0
    %502 = vmatpush1.msra.mxu0 0.0
    %503 = vmatprep.subr.mxu0 0.0
    %504 = vmatpush1.msra.mxu0 0.0
    %505 = vmatprep.subr.mxu0 0.0
    %506 = vmatpush1.msra.mxu0 0.0
    %507 = vmatprep.subr.mxu0 0.0
    %508 = vmatpush1.msra.mxu0 0.0
    %509 = vmatprep.subr.mxu0 0.0
    %510 = vmatpush1.msra.mxu0 0.0
    %511 = vmatprep.subr.mxu0 0.0
    %512 = vmatpush1.msra.mxu0 0.0
    %513 = vmatprep.mubr.f32.mxu0 0.0
    %v514 = vand.u32 %v32, 4294901760
    %515 = vmatmul.mubr.f32.gmra.mrb[0].mxu0 %v514
    %v516 = vpop.f32.mrb[0].mxu0
    %v517 = vadd.f32 %v439, %v516
    %v518 = vpop.f32.mrb[0].mxu0
    %519 = vmatprep.mubr.f32.mxu0 0.0
    %v520 = vand.u32 %v35, 4294901760
    %521 = vmatmul.mubr.f32.gmra.mrb[0].mxu0 %v520
    %v522 = vpop.f32.mrb[0].mxu0
    %v523 = vadd.f32 %v445, %v522
    %v524 = vpop.f32.mrb[0].mxu0
    %525 = vdwg.mxu0
    %v526 = vld [vmem:[%s4] sm:$0x1]
    %v528 = vlaneseq
    %v529 = vshrl.u32 %v528, 7
    %v530 = vsub.s32 0, %v529
    %v531 = vrot.slane %v526, %v530
    %533 = vmatprep.subr.mxu0 0.0
    %v534 = vand.u32 %v27, 4294901760
    %535 = vmatpush1.msra.mxu0 %v534
    %536 = vmatprep.subr.mxu0 0.0
    %537 = vmatpush1.msra.mxu0 0.0
    %538 = vmatprep.subr.mxu0 0.0
    %539 = vmatpush1.msra.mxu0 0.0
    %540 = vmatprep.subr.mxu0 0.0
    %541 = vmatpush1.msra.mxu0 0.0
    %542 = vmatprep.subr.mxu0 0.0
    %543 = vmatpush1.msra.mxu0 0.0
    %544 = vmatprep.subr.mxu0 0.0
    %545 = vmatpush1.msra.mxu0 0.0
    %546 = vmatprep.subr.mxu0 0.0
    %547 = vmatpush1.msra.mxu0 0.0
    %548 = vmatprep.subr.mxu0 0.0
    %549 = vmatpush1.msra.mxu0 0.0
    %550 = vmatprep.subr.mxu0 0.0
    %551 = vmatpush1.msra.mxu0 0.0
    %552 = vmatprep.subr.mxu0 0.0
    %553 = vmatpush1.msra.mxu0 0.0
    %554 = vmatprep.subr.mxu0 0.0
    %555 = vmatpush1.msra.mxu0 0.0
    %556 = vmatprep.subr.mxu0 0.0
    %557 = vmatpush1.msra.mxu0 0.0
    %558 = vmatprep.subr.mxu0 0.0
    %559 = vmatpush1.msra.mxu0 0.0
    %560 = vmatprep.subr.mxu0 0.0
    %561 = vmatpush1.msra.mxu0 0.0
    %562 = vmatprep.subr.mxu0 0.0
    %563 = vmatpush1.msra.mxu0 0.0
    %564 = vmatprep.subr.mxu0 0.0
    %565 = vmatpush1.msra.mxu0 0.0
    %566 = vmatprep.subr.mxu0 0.0
    %567 = vmatpush1.msra.mxu0 0.0
    %568 = vmatprep.subr.mxu0 0.0
    %569 = vmatpush1.msra.mxu0 0.0
    %570 = vmatprep.subr.mxu0 0.0
    %571 = vmatpush1.msra.mxu0 0.0
    %572 = vmatprep.subr.mxu0 0.0
    %573 = vmatpush1.msra.mxu0 0.0
    %574 = vmatprep.subr.mxu0 0.0
    %575 = vmatpush1.msra.mxu0 0.0
    %576 = vmatprep.subr.mxu0 0.0
    %577 = vmatpush1.msra.mxu0 0.0
    %578 = vmatprep.subr.mxu0 0.0
    %579 = vmatpush1.msra.mxu0 0.0
    %580 = vmatprep.subr.mxu0 0.0
    %581 = vmatpush1.msra.mxu0 0.0
    %582 = vmatprep.subr.mxu0 0.0
    %583 = vmatpush1.msra.mxu0 0.0
    %584 = vmatprep.subr.mxu0 0.0
    %585 = vmatpush1.msra.mxu0 0.0
    %586 = vmatprep.subr.mxu0 0.0
    %587 = vmatpush1.msra.mxu0 0.0
    %588 = vmatprep.subr.mxu0 0.0
    %589 = vmatpush1.msra.mxu0 0.0
    %590 = vmatprep.subr.mxu0 0.0
    %591 = vmatpush1.msra.mxu0 0.0
    %592 = vmatprep.subr.mxu0 0.0
    %593 = vmatpush1.msra.mxu0 0.0
    %594 = vmatprep.subr.mxu0 0.0
    %595 = vmatpush1.msra.mxu0 0.0
    %596 = vmatprep.subr.mxu0 0.0
    %597 = vmatpush1.msra.mxu0 0.0
    %598 = vmatprep.mubr.f32.mxu0 0.0
    %v599 = vand.u32 %v32, 4294901760
    %v600 = vsub.f32 %v32, %v599
    %v601 = vand.u32 %v600, 4294901760
    %v602 = vsub.f32 %v600, %v601
    %v603 = vand.u32 %v602, 4294901760
    %604 = vmatmul.mubr.f32.gmra.mrb[0].mxu0 %v603
    %v605 = vpop.f32.mrb[0].mxu0
    %v606 = vadd.f32 %v531, %v605
    %v607 = vpop.f32.mrb[0].mxu0
    %608 = vmatprep.mubr.f32.mxu0 0.0
    %v609 = vand.u32 %v35, 4294901760
    %v610 = vsub.f32 %v35, %v609
    %v611 = vand.u32 %v610, 4294901760
    %v612 = vsub.f32 %v610, %v611
    %v613 = vand.u32 %v612, 4294901760
    %614 = vmatmul.mubr.f32.gmra.mrb[0].mxu0 %v613
    %v615 = vpop.f32.mrb[0].mxu0
    %v616 = vadd.f32 %v531, %v615
    %v617 = vpop.f32.mrb[0].mxu0
    %618 = vdwg.mxu0
    %619 = vmatprep.subr.mxu0 0.0
    %v620 = vand.u32 %v27, 4294901760
    %v621 = vsub.f32 %v27, %v620
    %v622 = vand.u32 %v621, 4294901760
    %v623 = vsub.f32 %v621, %v622
    %v624 = vand.u32 %v623, 4294901760
    %625 = vmatpush1.msra.mxu0 %v624
    %626 = vmatprep.subr.mxu0 0.0
    %627 = vmatpush1.msra.mxu0 0.0
    %628 = vmatprep.subr.mxu0 0.0
    %629 = vmatpush1.msra.mxu0 0.0
    %630 = vmatprep.subr.mxu0 0.0
    %631 = vmatpush1.msra.mxu0 0.0
    %632 = vmatprep.subr.mxu0 0.0
    %633 = vmatpush1.msra.mxu0 0.0
    %634 = vmatprep.subr.mxu0 0.0
    %635 = vmatpush1.msra.mxu0 0.0
    %636 = vmatprep.subr.mxu0 0.0
    %637 = vmatpush1.msra.mxu0 0.0
    %638 = vmatprep.subr.mxu0 0.0
    %639 = vmatpush1.msra.mxu0 0.0
    %640 = vmatprep.subr.mxu0 0.0
    %641 = vmatpush1.msra.mxu0 0.0
    %642 = vmatprep.subr.mxu0 0.0
    %643 = vmatpush1.msra.mxu0 0.0
    %644 = vmatprep.subr.mxu0 0.0
    %645 = vmatpush1.msra.mxu0 0.0
    %646 = vmatprep.subr.mxu0 0.0
    %647 = vmatpush1.msra.mxu0 0.0
    %648 = vmatprep.subr.mxu0 0.0
    %649 = vmatpush1.msra.mxu0 0.0
    %650 = vmatprep.subr.mxu0 0.0
    %651 = vmatpush1.msra.mxu0 0.0
    %652 = vmatprep.subr.mxu0 0.0
    %653 = vmatpush1.msra.mxu0 0.0
    %654 = vmatprep.subr.mxu0 0.0
    %655 = vmatpush1.msra.mxu0 0.0
    %656 = vmatprep.subr.mxu0 0.0
    %657 = vmatpush1.msra.mxu0 0.0
    %658 = vmatprep.subr.mxu0 0.0
    %659 = vmatpush1.msra.mxu0 0.0
    %660 = vmatprep.subr.mxu0 0.0
    %661 = vmatpush1.msra.mxu0 0.0
    %662 = vmatprep.subr.mxu0 0.0
    %663 = vmatpush1.msra.mxu0 0.0
    %664 = vmatprep.subr.mxu0 0.0
    %665 = vmatpush1.msra.mxu0 0.0
    %666 = vmatprep.subr.mxu0 0.0
    %667 = vmatpush1.msra.mxu0 0.0
    %668 = vmatprep.subr.mxu0 0.0
    %669 = vmatpush1.msra.mxu0 0.0
    %670 = vmatprep.subr.mxu0 0.0
    %671 = vmatpush1.msra.mxu0 0.0
    %672 = vmatprep.subr.mxu0 0.0
    %673 = vmatpush1.msra.mxu0 0.0
    %674 = vmatprep.subr.mxu0 0.0
    %675 = vmatpush1.msra.mxu0 0.0
    %676 = vmatprep.subr.mxu0 0.0
    %677 = vmatpush1.msra.mxu0 0.0
    %678 = vmatprep.subr.mxu0 0.0
    %679 = vmatpush1.msra.mxu0 0.0
    %680 = vmatprep.subr.mxu0 0.0
    %681 = vmatpush1.msra.mxu0 0.0
    %682 = vmatprep.subr.mxu0 0.0
    %683 = vmatpush1.msra.mxu0 0.0
    %684 = vmatprep.subr.mxu0 0.0
    %685 = vmatpush1.msra.mxu0 0.0
    %686 = vmatprep.subr.mxu0 0.0
    %687 = vmatpush1.msra.mxu0 0.0
    %688 = vmatprep.mubr.f32.mxu0 0.0
    %v689 = vand.u32 %v32, 4294901760
    %690 = vmatmul.mubr.f32.gmra.mrb[0].mxu0 %v689
    %v691 = vpop.f32.mrb[0].mxu0
    %v692 = vadd.f32 %v606, %v691
    %v693 = vpop.f32.mrb[0].mxu0
    %694 = vmatprep.mubr.f32.mxu0 0.0
    %v695 = vand.u32 %v35, 4294901760
    %696 = vmatmul.mubr.f32.gmra.mrb[0].mxu0 %v695
    %v697 = vpop.f32.mrb[0].mxu0
    %v698 = vadd.f32 %v616, %v697
    %v699 = vpop.f32.mrb[0].mxu0
    %700 = vdwg.mxu0
    %701 = vmatprep.subr.mxu0 0.0
    %v702 = vand.u32 %v27, 4294901760
    %v703 = vsub.f32 %v27, %v702
    %704 = vmatpush1.msra.mxu0 %v703
    %705 = vmatprep.subr.mxu0 0.0
    %706 = vmatpush1.msra.mxu0 0.0
    %707 = vmatprep.subr.mxu0 0.0
    %708 = vmatpush1.msra.mxu0 0.0
    %709 = vmatprep.subr.mxu0 0.0
    %710 = vmatpush1.msra.mxu0 0.0
    %711 = vmatprep.subr.mxu0 0.0
    %712 = vmatpush1.msra.mxu0 0.0
    %713 = vmatprep.subr.mxu0 0.0
    %714 = vmatpush1.msra.mxu0 0.0
    %715 = vmatprep.subr.mxu0 0.0
    %716 = vmatpush1.msra.mxu0 0.0
    %717 = vmatprep.subr.mxu0 0.0
    %718 = vmatpush1.msra.mxu0 0.0
    %719 = vmatprep.subr.mxu0 0.0
    %720 = vmatpush1.msra.mxu0 0.0
    %721 = vmatprep.subr.mxu0 0.0
    %722 = vmatpush1.msra.mxu0 0.0
    %723 = vmatprep.subr.mxu0 0.0
    %724 = vmatpush1.msra.mxu0 0.0
    %725 = vmatprep.subr.mxu0 0.0
    %726 = vmatpush1.msra.mxu0 0.0
    %727 = vmatprep.subr.mxu0 0.0
    %728 = vmatpush1.msra.mxu0 0.0
    %729 = vmatprep.subr.mxu0 0.0
    %730 = vmatpush1.msra.mxu0 0.0
    %731 = vmatprep.subr.mxu0 0.0
    %732 = vmatpush1.msra.mxu0 0.0
    %733 = vmatprep.subr.mxu0 0.0
    %734 = vmatpush1.msra.mxu0 0.0
    %735 = vmatprep.subr.mxu0 0.0
    %736 = vmatpush1.msra.mxu0 0.0
    %737 = vmatprep.subr.mxu0 0.0
    %738 = vmatpush1.msra.mxu0 0.0
    %739 = vmatprep.subr.mxu0 0.0
    %740 = vmatpush1.msra.mxu0 0.0
    %741 = vmatprep.subr.mxu0 0.0
    %742 = vmatpush1.msra.mxu0 0.0
    %743 = vmatprep.subr.mxu0 0.0
    %744 = vmatpush1.msra.mxu0 0.0
    %745 = vmatprep.subr.mxu0 0.0
    %746 = vmatpush1.msra.mxu0 0.0
    %747 = vmatprep.subr.mxu0 0.0
    %748 = vmatpush1.msra.mxu0 0.0
    %749 = vmatprep.subr.mxu0 0.0
    %750 = vmatpush1.msra.mxu0 0.0
    %751 = vmatprep.subr.mxu0 0.0
    %752 = vmatpush1.msra.mxu0 0.0
    %753 = vmatprep.subr.mxu0 0.0
    %754 = vmatpush1.msra.mxu0 0.0
    %755 = vmatprep.subr.mxu0 0.0
    %756 = vmatpush1.msra.mxu0 0.0
    %757 = vmatprep.subr.mxu0 0.0
    %758 = vmatpush1.msra.mxu0 0.0
    %759 = vmatprep.subr.mxu0 0.0
    %760 = vmatpush1.msra.mxu0 0.0
    %761 = vmatprep.subr.mxu0 0.0
    %762 = vmatpush1.msra.mxu0 0.0
    %763 = vmatprep.subr.mxu0 0.0
    %764 = vmatpush1.msra.mxu0 0.0
    %765 = vmatprep.subr.mxu0 0.0
    %766 = vmatpush1.msra.mxu0 0.0
    %767 = vmatprep.mubr.f32.mxu0 0.0
    %v768 = vand.u32 %v32, 4294901760
    %v769 = vsub.f32 %v32, %v768
    %770 = vmatmul.mubr.f32.gmra.mrb[0].mxu0 %v769
    %v771 = vpop.f32.mrb[0].mxu0
    %v772 = vadd.f32 %v692, %v771
    %v773 = vpop.f32.mrb[0].mxu0
    %774 = vmatprep.mubr.f32.mxu0 0.0
    %v775 = vand.u32 %v35, 4294901760
    %v776 = vsub.f32 %v35, %v775
    %777 = vmatmul.mubr.f32.gmra.mrb[0].mxu0 %v776
    %v778 = vpop.f32.mrb[0].mxu0
    %v779 = vadd.f32 %v698, %v778
    %v780 = vpop.f32.mrb[0].mxu0
    %781 = vdwg.mxu0
    %782 = vmatprep.subr.mxu0 0.0
    %v783 = vand.u32 %v27, 4294901760
    %784 = vmatpush1.msra.mxu0 %v783
    %785 = vmatprep.subr.mxu0 0.0
    %786 = vmatpush1.msra.mxu0 0.0
    %787 = vmatprep.subr.mxu0 0.0
    %788 = vmatpush1.msra.mxu0 0.0
    %789 = vmatprep.subr.mxu0 0.0
    %790 = vmatpush1.msra.mxu0 0.0
    %791 = vmatprep.subr.mxu0 0.0
    %792 = vmatpush1.msra.mxu0 0.0
    %793 = vmatprep.subr.mxu0 0.0
    %794 = vmatpush1.msra.mxu0 0.0
    %795 = vmatprep.subr.mxu0 0.0
    %796 = vmatpush1.msra.mxu0 0.0
    %797 = vmatprep.subr.mxu0 0.0
    %798 = vmatpush1.msra.mxu0 0.0
    %799 = vmatprep.subr.mxu0 0.0
    %800 = vmatpush1.msra.mxu0 0.0
    %801 = vmatprep.subr.mxu0 0.0
    %802 = vmatpush1.msra.mxu0 0.0
    %803 = vmatprep.subr.mxu0 0.0
    %804 = vmatpush1.msra.mxu0 0.0
    %805 = vmatprep.subr.mxu0 0.0
    %806 = vmatpush1.msra.mxu0 0.0
    %807 = vmatprep.subr.mxu0 0.0
    %808 = vmatpush1.msra.mxu0 0.0
    %809 = vmatprep.subr.mxu0 0.0
    %810 = vmatpush1.msra.mxu0 0.0
    %811 = vmatprep.subr.mxu0 0.0
    %812 = vmatpush1.msra.mxu0 0.0
    %813 = vmatprep.subr.mxu0 0.0
    %814 = vmatpush1.msra.mxu0 0.0
    %815 = vmatprep.subr.mxu0 0.0
    %816 = vmatpush1.msra.mxu0 0.0
    %817 = vmatprep.subr.mxu0 0.0
    %818 = vmatpush1.msra.mxu0 0.0
    %819 = vmatprep.subr.mxu0 0.0
    %820 = vmatpush1.msra.mxu0 0.0
    %821 = vmatprep.subr.mxu0 0.0
    %822 = vmatpush1.msra.mxu0 0.0
    %823 = vmatprep.subr.mxu0 0.0
    %824 = vmatpush1.msra.mxu0 0.0
    %825 = vmatprep.subr.mxu0 0.0
    %826 = vmatpush1.msra.mxu0 0.0
    %827 = vmatprep.subr.mxu0 0.0
    %828 = vmatpush1.msra.mxu0 0.0
    %829 = vmatprep.subr.mxu0 0.0
    %830 = vmatpush1.msra.mxu0 0.0
    %831 = vmatprep.subr.mxu0 0.0
    %832 = vmatpush1.msra.mxu0 0.0
    %833 = vmatprep.subr.mxu0 0.0
    %834 = vmatpush1.msra.mxu0 0.0
    %835 = vmatprep.subr.mxu0 0.0
    %836 = vmatpush1.msra.mxu0 0.0
    %837 = vmatprep.subr.mxu0 0.0
    %838 = vmatpush1.msra.mxu0 0.0
    %839 = vmatprep.subr.mxu0 0.0
    %840 = vmatpush1.msra.mxu0 0.0
    %841 = vmatprep.subr.mxu0 0.0
    %842 = vmatpush1.msra.mxu0 0.0
    %843 = vmatprep.subr.mxu0 0.0
    %844 = vmatpush1.msra.mxu0 0.0
    %845 = vmatprep.subr.mxu0 0.0
    %846 = vmatpush1.msra.mxu0 0.0
    %847 = vmatprep.mubr.f32.mxu0 0.0
    %v848 = vand.u32 %v32, 4294901760
    %v849 = vsub.f32 %v32, %v848
    %v850 = vand.u32 %v849, 4294901760
    %851 = vmatmul.mubr.f32.gmra.mrb[0].mxu0 %v850
    %v852 = vpop.f32.mrb[0].mxu0
    %v853 = vadd.f32 %v772, %v852
    %v854 = vpop.f32.mrb[0].mxu0
    %855 = vmatprep.mubr.f32.mxu0 0.0
    %v856 = vand.u32 %v35, 4294901760
    %v857 = vsub.f32 %v35, %v856
    %v858 = vand.u32 %v857, 4294901760
    %859 = vmatmul.mubr.f32.gmra.mrb[0].mxu0 %v858
    %v860 = vpop.f32.mrb[0].mxu0
    %v861 = vadd.f32 %v779, %v860
    %v862 = vpop.f32.mrb[0].mxu0
    %863 = vdwg.mxu0
    %864 = vmatprep.subr.mxu0 0.0
    %v865 = vand.u32 %v27, 4294901760
    %v866 = vsub.f32 %v27, %v865
    %v867 = vand.u32 %v866, 4294901760
    %868 = vmatpush1.msra.mxu0 %v867
    %869 = vmatprep.subr.mxu0 0.0
    %870 = vmatpush1.msra.mxu0 0.0
    %871 = vmatprep.subr.mxu0 0.0
    %872 = vmatpush1.msra.mxu0 0.0
    %873 = vmatprep.subr.mxu0 0.0
    %874 = vmatpush1.msra.mxu0 0.0
    %875 = vmatprep.subr.mxu0 0.0
    %876 = vmatpush1.msra.mxu0 0.0
    %877 = vmatprep.subr.mxu0 0.0
    %878 = vmatpush1.msra.mxu0 0.0
    %879 = vmatprep.subr.mxu0 0.0
    %880 = vmatpush1.msra.mxu0 0.0
    %881 = vmatprep.subr.mxu0 0.0
    %882 = vmatpush1.msra.mxu0 0.0
    %883 = vmatprep.subr.mxu0 0.0
    %884 = vmatpush1.msra.mxu0 0.0
    %885 = vmatprep.subr.mxu0 0.0
    %886 = vmatpush1.msra.mxu0 0.0
    %887 = vmatprep.subr.mxu0 0.0
    %888 = vmatpush1.msra.mxu0 0.0
    %889 = vmatprep.subr.mxu0 0.0
    %890 = vmatpush1.msra.mxu0 0.0
    %891 = vmatprep.subr.mxu0 0.0
    %892 = vmatpush1.msra.mxu0 0.0
    %893 = vmatprep.subr.mxu0 0.0
    %894 = vmatpush1.msra.mxu0 0.0
    %895 = vmatprep.subr.mxu0 0.0
    %896 = vmatpush1.msra.mxu0 0.0
    %897 = vmatprep.subr.mxu0 0.0
    %898 = vmatpush1.msra.mxu0 0.0
    %899 = vmatprep.subr.mxu0 0.0
    %900 = vmatpush1.msra.mxu0 0.0
    %901 = vmatprep.subr.mxu0 0.0
    %902 = vmatpush1.msra.mxu0 0.0
    %903 = vmatprep.subr.mxu0 0.0
    %904 = vmatpush1.msra.mxu0 0.0
    %905 = vmatprep.subr.mxu0 0.0
    %906 = vmatpush1.msra.mxu0 0.0
    %907 = vmatprep.subr.mxu0 0.0
    %908 = vmatpush1.msra.mxu0 0.0
    %909 = vmatprep.subr.mxu0 0.0
    %910 = vmatpush1.msra.mxu0 0.0
    %911 = vmatprep.subr.mxu0 0.0
    %912 = vmatpush1.msra.mxu0 0.0
    %913 = vmatprep.subr.mxu0 0.0
    %914 = vmatpush1.msra.mxu0 0.0
    %915 = vmatprep.subr.mxu0 0.0
    %916 = vmatpush1.msra.mxu0 0.0
    %917 = vmatprep.subr.mxu0 0.0
    %918 = vmatpush1.msra.mxu0 0.0
    %919 = vmatprep.subr.mxu0 0.0
    %920 = vmatpush1.msra.mxu0 0.0
    %921 = vmatprep.subr.mxu0 0.0
    %922 = vmatpush1.msra.mxu0 0.0
    %923 = vmatprep.subr.mxu0 0.0
    %924 = vmatpush1.msra.mxu0 0.0
    %925 = vmatprep.subr.mxu0 0.0
    %926 = vmatpush1.msra.mxu0 0.0
    %927 = vmatprep.subr.mxu0 0.0
    %928 = vmatpush1.msra.mxu0 0.0
    %929 = vmatprep.subr.mxu0 0.0
    %930 = vmatpush1.msra.mxu0 0.0
    %931 = vmatprep.mubr.f32.mxu0 0.0
    %v932 = vand.u32 %v32, 4294901760
    %933 = vmatmul.mubr.f32.gmra.mrb[0].mxu0 %v932
    %v934 = vpop.f32.mrb[0].mxu0
    %v935 = vadd.f32 %v853, %v934
    %v936 = vpop.f32.mrb[0].mxu0
    %937 = vmatprep.mubr.f32.mxu0 0.0
    %v938 = vand.u32 %v35, 4294901760
    %939 = vmatmul.mubr.f32.gmra.mrb[0].mxu0 %v938
    %v940 = vpop.f32.mrb[0].mxu0
    %v941 = vadd.f32 %v861, %v940
    %v942 = vpop.f32.mrb[0].mxu0
    %943 = vdwg.mxu0
    %944 = vmatprep.subr.mxu0 0.0
    %v945 = vand.u32 %v27, 4294901760
    %946 = vmatpush1.msra.mxu0 %v945
    %947 = vmatprep.subr.mxu0 0.0
    %948 = vmatpush1.msra.mxu0 0.0
    %949 = vmatprep.subr.mxu0 0.0
    %950 = vmatpush1.msra.mxu0 0.0
    %951 = vmatprep.subr.mxu0 0.0
    %952 = vmatpush1.msra.mxu0 0.0
    %953 = vmatprep.subr.mxu0 0.0
    %954 = vmatpush1.msra.mxu0 0.0
    %955 = vmatprep.subr.mxu0 0.0
    %956 = vmatpush1.msra.mxu0 0.0
    %957 = vmatprep.subr.mxu0 0.0
    %958 = vmatpush1.msra.mxu0 0.0
    %959 = vmatprep.subr.mxu0 0.0
    %960 = vmatpush1.msra.mxu0 0.0
    %961 = vmatprep.subr.mxu0 0.0
    %962 = vmatpush1.msra.mxu0 0.0
    %963 = vmatprep.subr.mxu0 0.0
    %964 = vmatpush1.msra.mxu0 0.0
    %965 = vmatprep.subr.mxu0 0.0
    %966 = vmatpush1.msra.mxu0 0.0
    %967 = vmatprep.subr.mxu0 0.0
    %968 = vmatpush1.msra.mxu0 0.0
    %969 = vmatprep.subr.mxu0 0.0
    %970 = vmatpush1.msra.mxu0 0.0
    %971 = vmatprep.subr.mxu0 0.0
    %972 = vmatpush1.msra.mxu0 0.0
    %973 = vmatprep.subr.mxu0 0.0
    %974 = vmatpush1.msra.mxu0 0.0
    %975 = vmatprep.subr.mxu0 0.0
    %976 = vmatpush1.msra.mxu0 0.0
    %977 = vmatprep.subr.mxu0 0.0
    %978 = vmatpush1.msra.mxu0 0.0
    %979 = vmatprep.subr.mxu0 0.0
    %980 = vmatpush1.msra.mxu0 0.0
    %981 = vmatprep.subr.mxu0 0.0
    %982 = vmatpush1.msra.mxu0 0.0
    %983 = vmatprep.subr.mxu0 0.0
    %984 = vmatpush1.msra.mxu0 0.0
    %985 = vmatprep.subr.mxu0 0.0
    %986 = vmatpush1.msra.mxu0 0.0
    %987 = vmatprep.subr.mxu0 0.0
    %988 = vmatpush1.msra.mxu0 0.0
    %989 = vmatprep.subr.mxu0 0.0
    %990 = vmatpush1.msra.mxu0 0.0
    %991 = vmatprep.subr.mxu0 0.0
    %992 = vmatpush1.msra.mxu0 0.0
    %993 = vmatprep.subr.mxu0 0.0
    %994 = vmatpush1.msra.mxu0 0.0
    %995 = vmatprep.subr.mxu0 0.0
    %996 = vmatpush1.msra.mxu0 0.0
    %997 = vmatprep.subr.mxu0 0.0
    %998 = vmatpush1.msra.mxu0 0.0
    %999 = vmatprep.subr.mxu0 0.0
    %1000 = vmatpush1.msra.mxu0 0.0
    %1001 = vmatprep.subr.mxu0 0.0
    %1002 = vmatpush1.msra.mxu0 0.0
    %1003 = vmatprep.subr.mxu0 0.0
    %1004 = vmatpush1.msra.mxu0 0.0
    %1005 = vmatprep.subr.mxu0 0.0
    %1006 = vmatpush1.msra.mxu0 0.0
    %1007 = vmatprep.subr.mxu0 0.0
    %1008 = vmatpush1.msra.mxu0 0.0
    %1009 = vmatprep.mubr.f32.mxu0 0.0
    %v1010 = vand.u32 %v32, 4294901760
    %1011 = vmatmul.mubr.f32.gmra.mrb[0].mxu0 %v1010
    %v1012 = vpop.f32.mrb[0].mxu0
    %v1013 = vadd.f32 %v935, %v1012
    %v1014 = vpop.f32.mrb[0].mxu0
    %1015 = vmatprep.mubr.f32.mxu0 0.0
    %v1016 = vand.u32 %v35, 4294901760
    %1017 = vmatmul.mubr.f32.gmra.mrb[0].mxu0 %v1016
    %v1018 = vpop.f32.mrb[0].mxu0
    %v1019 = vadd.f32 %v941, %v1018
    %v1020 = vpop.f32.mrb[0].mxu0
    %1021 = vdwg.mxu0
    %v1022 = vld [vmem:[%s1] sm:$0xf]
    %v1023 = vlaneseq
    %v1024 = vand.u32 %v1023, 127
    %1025 = vset.pattern.permute.xlu0 0
    %1026 = vperm.xlu0 %1025, %v1022
    %v1027 = vpop.permute.xlu0 %1026
    %vm1028 = vcmp.eq.s32.totalorder %v1024, %v1027
    %v1029 = vsel %vm1028, 1, 0
    %v1030 = vcvt.s32.f32 %v1029
    %v1031 = vld [vmem:[%s0] sm:$0xf]
    %vm1032 = vcmask 130048
    %v1034 = vsel %vm1032, %v1030, 0
    %1036 = vmatprep.subr.mxu0 0.0
    %v1037 = vand.u32 %v517, 4294901760
    %1038 = vmatpush1.msra.mxu0 %v1037
    %1039 = vmatprep.subr.mxu0 0.0
    %v1040 = vand.u32 %v523, 4294901760
    %1041 = vmatpush1.msra.mxu0 %v1040
    %1042 = vmatprep.subr.mxu0 0.0
    %1043 = vmatpush1.msra.mxu0 0.0
    %1044 = vmatprep.subr.mxu0 0.0
    %1045 = vmatpush1.msra.mxu0 0.0
    %1046 = vmatprep.subr.mxu0 0.0
    %1047 = vmatpush1.msra.mxu0 0.0
    %1048 = vmatprep.subr.mxu0 0.0
    %1049 = vmatpush1.msra.mxu0 0.0
    %1050 = vmatprep.subr.mxu0 0.0
    %1051 = vmatpush1.msra.mxu0 0.0
    %1052 = vmatprep.subr.mxu0 0.0
    %1053 = vmatpush1.msra.mxu0 0.0
    %1054 = vmatprep.subr.mxu0 0.0
    %1055 = vmatpush1.msra.mxu0 0.0
    %1056 = vmatprep.subr.mxu0 0.0
    %1057 = vmatpush1.msra.mxu0 0.0
    %1058 = vmatprep.subr.mxu0 0.0
    %1059 = vmatpush1.msra.mxu0 0.0
    %1060 = vmatprep.subr.mxu0 0.0
    %1061 = vmatpush1.msra.mxu0 0.0
    %1062 = vmatprep.subr.mxu0 0.0
    %1063 = vmatpush1.msra.mxu0 0.0
    %1064 = vmatprep.subr.mxu0 0.0
    %1065 = vmatpush1.msra.mxu0 0.0
    %1066 = vmatprep.subr.mxu0 0.0
    %1067 = vmatpush1.msra.mxu0 0.0
    %1068 = vmatprep.subr.mxu0 0.0
    %1069 = vmatpush1.msra.mxu0 0.0
    %1070 = vmatprep.subr.mxu0 0.0
    %1071 = vmatpush1.msra.mxu0 0.0
    %1072 = vmatprep.subr.mxu0 0.0
    %1073 = vmatpush1.msra.mxu0 0.0
    %1074 = vmatprep.subr.mxu0 0.0
    %1075 = vmatpush1.msra.mxu0 0.0
    %1076 = vmatprep.subr.mxu0 0.0
    %1077 = vmatpush1.msra.mxu0 0.0
    %1078 = vmatprep.subr.mxu0 0.0
    %1079 = vmatpush1.msra.mxu0 0.0
    %1080 = vmatprep.subr.mxu0 0.0
    %1081 = vmatpush1.msra.mxu0 0.0
    %1082 = vmatprep.subr.mxu0 0.0
    %1083 = vmatpush1.msra.mxu0 0.0
    %1084 = vmatprep.subr.mxu0 0.0
    %1085 = vmatpush1.msra.mxu0 0.0
    %1086 = vmatprep.subr.mxu0 0.0
    %1087 = vmatpush1.msra.mxu0 0.0
    %1088 = vmatprep.subr.mxu0 0.0
    %1089 = vmatpush1.msra.mxu0 0.0
    %1090 = vmatprep.subr.mxu0 0.0
    %1091 = vmatpush1.msra.mxu0 0.0
    %1092 = vmatprep.subr.mxu0 0.0
    %1093 = vmatpush1.msra.mxu0 0.0
    %1094 = vmatprep.subr.mxu0 0.0
    %1095 = vmatpush1.msra.mxu0 0.0
    %1096 = vmatprep.subr.mxu0 0.0
    %1097 = vmatpush1.msra.mxu0 0.0
    %1098 = vmatprep.subr.mxu0 0.0
    %1099 = vmatpush1.msra.mxu0 0.0
    %1100 = vmatprep.subr.mxu0 0.0
    %1101 = vmatpush1.msra.mxu0 0.0
    %1102 = vmatprep.mubr.f32.mxu0 0.0
    %v1103 = vand.u32 %v1034, 4294901760
    %v1104 = vsub.f32 %v1034, %v1103
    %v1105 = vand.u32 %v1104, 4294901760
    %v1106 = vsub.f32 %v1104, %v1105
    %v1107 = vand.u32 %v1106, 4294901760
    %1108 = vmatmul.mubr.f32.gmra.mrb[0].mxu0 %v1107
    %v1109 = vpop.f32.mrb[0].mxu0
    %v1110 = vadd.f32 0.0, %v1109
    %v1111 = vpop.f32.mrb[0].mxu0
    %1112 = vdwg.mxu0
    %1113 = vmatprep.subr.mxu0 0.0
    %v1114 = vand.u32 %v517, 4294901760
    %v1115 = vsub.f32 %v517, %v1114
    %v1116 = vand.u32 %v1115, 4294901760
    %v1117 = vsub.f32 %v1115, %v1116
    %v1118 = vand.u32 %v1117, 4294901760
    %1119 = vmatpush1.msra.mxu0 %v1118
    %1120 = vmatprep.subr.mxu0 0.0
    %v1121 = vand.u32 %v523, 4294901760
    %v1122 = vsub.f32 %v523, %v1121
    %v1123 = vand.u32 %v1122, 4294901760
    %v1124 = vsub.f32 %v1122, %v1123
    %v1125 = vand.u32 %v1124, 4294901760
    %1126 = vmatpush1.msra.mxu0 %v1125
    %1127 = vmatprep.subr.mxu0 0.0
    %1128 = vmatpush1.msra.mxu0 0.0
    %1129 = vmatprep.subr.mxu0 0.0
    %1130 = vmatpush1.msra.mxu0 0.0
    %1131 = vmatprep.subr.mxu0 0.0
    %1132 = vmatpush1.msra.mxu0 0.0
    %1133 = vmatprep.subr.mxu0 0.0
    %1134 = vmatpush1.msra.mxu0 0.0
    %1135 = vmatprep.subr.mxu0 0.0
    %1136 = vmatpush1.msra.mxu0 0.0
    %1137 = vmatprep.subr.mxu0 0.0
    %1138 = vmatpush1.msra.mxu0 0.0
    %1139 = vmatprep.subr.mxu0 0.0
    %1140 = vmatpush1.msra.mxu0 0.0
    %1141 = vmatprep.subr.mxu0 0.0
    %1142 = vmatpush1.msra.mxu0 0.0
    %1143 = vmatprep.subr.mxu0 0.0
    %1144 = vmatpush1.msra.mxu0 0.0
    %1145 = vmatprep.subr.mxu0 0.0
    %1146 = vmatpush1.msra.mxu0 0.0
    %1147 = vmatprep.subr.mxu0 0.0
    %1148 = vmatpush1.msra.mxu0 0.0
    %1149 = vmatprep.subr.mxu0 0.0
    %1150 = vmatpush1.msra.mxu0 0.0
    %1151 = vmatprep.subr.mxu0 0.0
    %1152 = vmatpush1.msra.mxu0 0.0
    %1153 = vmatprep.subr.mxu0 0.0
    %1154 = vmatpush1.msra.mxu0 0.0
    %1155 = vmatprep.subr.mxu0 0.0
    %1156 = vmatpush1.msra.mxu0 0.0
    %1157 = vmatprep.subr.mxu0 0.0
    %1158 = vmatpush1.msra.mxu0 0.0
    %1159 = vmatprep.subr.mxu0 0.0
    %1160 = vmatpush1.msra.mxu0 0.0
    %1161 = vmatprep.subr.mxu0 0.0
    %1162 = vmatpush1.msra.mxu0 0.0
    %1163 = vmatprep.subr.mxu0 0.0
    %1164 = vmatpush1.msra.mxu0 0.0
    %1165 = vmatprep.subr.mxu0 0.0
    %1166 = vmatpush1.msra.mxu0 0.0
    %1167 = vmatprep.subr.mxu0 0.0
    %1168 = vmatpush1.msra.mxu0 0.0
    %1169 = vmatprep.subr.mxu0 0.0
    %1170 = vmatpush1.msra.mxu0 0.0
    %1171 = vmatprep.subr.mxu0 0.0
    %1172 = vmatpush1.msra.mxu0 0.0
    %1173 = vmatprep.subr.mxu0 0.0
    %1174 = vmatpush1.msra.mxu0 0.0
    %1175 = vmatprep.subr.mxu0 0.0
    %1176 = vmatpush1.msra.mxu0 0.0
    %1177 = vmatprep.subr.mxu0 0.0
    %1178 = vmatpush1.msra.mxu0 0.0
    %1179 = vmatprep.subr.mxu0 0.0
    %1180 = vmatpush1.msra.mxu0 0.0
    %1181 = vmatprep.subr.mxu0 0.0
    %1182 = vmatpush1.msra.mxu0 0.0
    %1183 = vmatprep.subr.mxu0 0.0
    %1184 = vmatpush1.msra.mxu0 0.0
    %1185 = vmatprep.subr.mxu0 0.0
    %1186 = vmatpush1.msra.mxu0 0.0
    %1187 = vmatprep.mubr.f32.mxu0 0.0
    %v1188 = vand.u32 %v1034, 4294901760
    %1189 = vmatmul.mubr.f32.gmra.mrb[0].mxu0 %v1188
    %v1190 = vpop.f32.mrb[0].mxu0
    %v1191 = vadd.f32 %v1110, %v1190
    %v1192 = vpop.f32.mrb[0].mxu0
    %1193 = vdwg.mxu0
    %1194 = vmatprep.subr.mxu0 0.0
    %v1195 = vand.u32 %v517, 4294901760
    %v1196 = vsub.f32 %v517, %v1195
    %1197 = vmatpush1.msra.mxu0 %v1196
    %1198 = vmatprep.subr.mxu0 0.0
    %v1199 = vand.u32 %v523, 4294901760
    %v1200 = vsub.f32 %v523, %v1199
    %1201 = vmatpush1.msra.mxu0 %v1200
    %1202 = vmatprep.subr.mxu0 0.0
    %1203 = vmatpush1.msra.mxu0 0.0
    %1204 = vmatprep.subr.mxu0 0.0
    %1205 = vmatpush1.msra.mxu0 0.0
    %1206 = vmatprep.subr.mxu0 0.0
    %1207 = vmatpush1.msra.mxu0 0.0
    %1208 = vmatprep.subr.mxu0 0.0
    %1209 = vmatpush1.msra.mxu0 0.0
    %1210 = vmatprep.subr.mxu0 0.0
    %1211 = vmatpush1.msra.mxu0 0.0
    %1212 = vmatprep.subr.mxu0 0.0
    %1213 = vmatpush1.msra.mxu0 0.0
    %1214 = vmatprep.subr.mxu0 0.0
    %1215 = vmatpush1.msra.mxu0 0.0
    %1216 = vmatprep.subr.mxu0 0.0
    %1217 = vmatpush1.msra.mxu0 0.0
    %1218 = vmatprep.subr.mxu0 0.0
    %1219 = vmatpush1.msra.mxu0 0.0
    %1220 = vmatprep.subr.mxu0 0.0
    %1221 = vmatpush1.msra.mxu0 0.0
    %1222 = vmatprep.subr.mxu0 0.0
    %1223 = vmatpush1.msra.mxu0 0.0
    %1224 = vmatprep.subr.mxu0 0.0
    %1225 = vmatpush1.msra.mxu0 0.0
    %1226 = vmatprep.subr.mxu0 0.0
    %1227 = vmatpush1.msra.mxu0 0.0
    %1228 = vmatprep.subr.mxu0 0.0
    %1229 = vmatpush1.msra.mxu0 0.0
    %1230 = vmatprep.subr.mxu0 0.0
    %1231 = vmatpush1.msra.mxu0 0.0
    %1232 = vmatprep.subr.mxu0 0.0
    %1233 = vmatpush1.msra.mxu0 0.0
    %1234 = vmatprep.subr.mxu0 0.0
    %1235 = vmatpush1.msra.mxu0 0.0
    %1236 = vmatprep.subr.mxu0 0.0
    %1237 = vmatpush1.msra.mxu0 0.0
    %1238 = vmatprep.subr.mxu0 0.0
    %1239 = vmatpush1.msra.mxu0 0.0
    %1240 = vmatprep.subr.mxu0 0.0
    %1241 = vmatpush1.msra.mxu0 0.0
    %1242 = vmatprep.subr.mxu0 0.0
    %1243 = vmatpush1.msra.mxu0 0.0
    %1244 = vmatprep.subr.mxu0 0.0
    %1245 = vmatpush1.msra.mxu0 0.0
    %1246 = vmatprep.subr.mxu0 0.0
    %1247 = vmatpush1.msra.mxu0 0.0
    %1248 = vmatprep.subr.mxu0 0.0
    %1249 = vmatpush1.msra.mxu0 0.0
    %1250 = vmatprep.subr.mxu0 0.0
    %1251 = vmatpush1.msra.mxu0 0.0
    %1252 = vmatprep.subr.mxu0 0.0
    %1253 = vmatpush1.msra.mxu0 0.0
    %1254 = vmatprep.subr.mxu0 0.0
    %1255 = vmatpush1.msra.mxu0 0.0
    %1256 = vmatprep.subr.mxu0 0.0
    %1257 = vmatpush1.msra.mxu0 0.0
    %1258 = vmatprep.subr.mxu0 0.0
    %1259 = vmatpush1.msra.mxu0 0.0
    %1260 = vmatprep.subr.mxu0 0.0
    %1261 = vmatpush1.msra.mxu0 0.0
    %1262 = vmatprep.mubr.f32.mxu0 0.0
    %v1263 = vand.u32 %v1034, 4294901760
    %v1264 = vsub.f32 %v1034, %v1263
    %1265 = vmatmul.mubr.f32.gmra.mrb[0].mxu0 %v1264
    %v1266 = vpop.f32.mrb[0].mxu0
    %v1267 = vadd.f32 %v1191, %v1266
    %v1268 = vpop.f32.mrb[0].mxu0
    %1269 = vdwg.mxu0
    %1270 = vmatprep.subr.mxu0 0.0
    %v1271 = vand.u32 %v517, 4294901760
    %1272 = vmatpush1.msra.mxu0 %v1271
    %1273 = vmatprep.subr.mxu0 0.0
    %v1274 = vand.u32 %v523, 4294901760
    %1275 = vmatpush1.msra.mxu0 %v1274
    %1276 = vmatprep.subr.mxu0 0.0
    %1277 = vmatpush1.msra.mxu0 0.0
    %1278 = vmatprep.subr.mxu0 0.0
    %1279 = vmatpush1.msra.mxu0 0.0
    %1280 = vmatprep.subr.mxu0 0.0
    %1281 = vmatpush1.msra.mxu0 0.0
    %1282 = vmatprep.subr.mxu0 0.0
    %1283 = vmatpush1.msra.mxu0 0.0
    %1284 = vmatprep.subr.mxu0 0.0
    %1285 = vmatpush1.msra.mxu0 0.0
    %1286 = vmatprep.subr.mxu0 0.0
    %1287 = vmatpush1.msra.mxu0 0.0
    %1288 = vmatprep.subr.mxu0 0.0
    %1289 = vmatpush1.msra.mxu0 0.0
    %1290 = vmatprep.subr.mxu0 0.0
    %1291 = vmatpush1.msra.mxu0 0.0
    %1292 = vmatprep.subr.mxu0 0.0
    %1293 = vmatpush1.msra.mxu0 0.0
    %1294 = vmatprep.subr.mxu0 0.0
    %1295 = vmatpush1.msra.mxu0 0.0
    %1296 = vmatprep.subr.mxu0 0.0
    %1297 = vmatpush1.msra.mxu0 0.0
    %1298 = vmatprep.subr.mxu0 0.0
    %1299 = vmatpush1.msra.mxu0 0.0
    %1300 = vmatprep.subr.mxu0 0.0
    %1301 = vmatpush1.msra.mxu0 0.0
    %1302 = vmatprep.subr.mxu0 0.0
    %1303 = vmatpush1.msra.mxu0 0.0
    %1304 = vmatprep.subr.mxu0 0.0
    %1305 = vmatpush1.msra.mxu0 0.0
    %1306 = vmatprep.subr.mxu0 0.0
    %1307 = vmatpush1.msra.mxu0 0.0
    %1308 = vmatprep.subr.mxu0 0.0
    %1309 = vmatpush1.msra.mxu0 0.0
    %1310 = vmatprep.subr.mxu0 0.0
    %1311 = vmatpush1.msra.mxu0 0.0
    %1312 = vmatprep.subr.mxu0 0.0
    %1313 = vmatpush1.msra.mxu0 0.0
    %1314 = vmatprep.subr.mxu0 0.0
    %1315 = vmatpush1.msra.mxu0 0.0
    %1316 = vmatprep.subr.mxu0 0.0
    %1317 = vmatpush1.msra.mxu0 0.0
    %1318 = vmatprep.subr.mxu0 0.0
    %1319 = vmatpush1.msra.mxu0 0.0
    %1320 = vmatprep.subr.mxu0 0.0
    %1321 = vmatpush1.msra.mxu0 0.0
    %1322 = vmatprep.subr.mxu0 0.0
    %1323 = vmatpush1.msra.mxu0 0.0
    %1324 = vmatprep.subr.mxu0 0.0
    %1325 = vmatpush1.msra.mxu0 0.0
    %1326 = vmatprep.subr.mxu0 0.0
    %1327 = vmatpush1.msra.mxu0 0.0
    %1328 = vmatprep.subr.mxu0 0.0
    %1329 = vmatpush1.msra.mxu0 0.0
    %1330 = vmatprep.subr.mxu0 0.0
    %1331 = vmatpush1.msra.mxu0 0.0
    %1332 = vmatprep.subr.mxu0 0.0
    %1333 = vmatpush1.msra.mxu0 0.0
    %1334 = vmatprep.subr.mxu0 0.0
    %1335 = vmatpush1.msra.mxu0 0.0
    %1336 = vmatprep.mubr.f32.mxu0 0.0
    %v1337 = vand.u32 %v1034, 4294901760
    %v1338 = vsub.f32 %v1034, %v1337
    %v1339 = vand.u32 %v1338, 4294901760
    %1340 = vmatmul.mubr.f32.gmra.mrb[0].mxu0 %v1339
    %v1341 = vpop.f32.mrb[0].mxu0
    %v1342 = vadd.f32 %v1267, %v1341
    %v1343 = vpop.f32.mrb[0].mxu0
    %1344 = vdwg.mxu0
    %1345 = vmatprep.subr.mxu0 0.0
    %v1346 = vand.u32 %v517, 4294901760
    %v1347 = vsub.f32 %v517, %v1346
    %v1348 = vand.u32 %v1347, 4294901760
    %1349 = vmatpush1.msra.mxu0 %v1348
    %1350 = vmatprep.subr.mxu0 0.0
    %v1351 = vand.u32 %v523, 4294901760
    %v1352 = vsub.f32 %v523, %v1351
    %v1353 = vand.u32 %v1352, 4294901760
    %1354 = vmatpush1.msra.mxu0 %v1353
    %1355 = vmatprep.subr.mxu0 0.0
    %1356 = vmatpush1.msra.mxu0 0.0
    %1357 = vmatprep.subr.mxu0 0.0
    %1358 = vmatpush1.msra.mxu0 0.0
    %1359 = vmatprep.subr.mxu0 0.0
    %1360 = vmatpush1.msra.mxu0 0.0
    %1361 = vmatprep.subr.mxu0 0.0
    %1362 = vmatpush1.msra.mxu0 0.0
    %1363 = vmatprep.subr.mxu0 0.0
    %1364 = vmatpush1.msra.mxu0 0.0
    %1365 = vmatprep.subr.mxu0 0.0
    %1366 = vmatpush1.msra.mxu0 0.0
    %1367 = vmatprep.subr.mxu0 0.0
    %1368 = vmatpush1.msra.mxu0 0.0
    %1369 = vmatprep.subr.mxu0 0.0
    %1370 = vmatpush1.msra.mxu0 0.0
    %1371 = vmatprep.subr.mxu0 0.0
    %1372 = vmatpush1.msra.mxu0 0.0
    %1373 = vmatprep.subr.mxu0 0.0
    %1374 = vmatpush1.msra.mxu0 0.0
    %1375 = vmatprep.subr.mxu0 0.0
    %1376 = vmatpush1.msra.mxu0 0.0
    %1377 = vmatprep.subr.mxu0 0.0
    %1378 = vmatpush1.msra.mxu0 0.0
    %1379 = vmatprep.subr.mxu0 0.0
    %1380 = vmatpush1.msra.mxu0 0.0
    %1381 = vmatprep.subr.mxu0 0.0
    %1382 = vmatpush1.msra.mxu0 0.0
    %1383 = vmatprep.subr.mxu0 0.0
    %1384 = vmatpush1.msra.mxu0 0.0
    %1385 = vmatprep.subr.mxu0 0.0
    %1386 = vmatpush1.msra.mxu0 0.0
    %1387 = vmatprep.subr.mxu0 0.0
    %1388 = vmatpush1.msra.mxu0 0.0
    %1389 = vmatprep.subr.mxu0 0.0
    %1390 = vmatpush1.msra.mxu0 0.0
    %1391 = vmatprep.subr.mxu0 0.0
    %1392 = vmatpush1.msra.mxu0 0.0
    %1393 = vmatprep.subr.mxu0 0.0
    %1394 = vmatpush1.msra.mxu0 0.0
    %1395 = vmatprep.subr.mxu0 0.0
    %1396 = vmatpush1.msra.mxu0 0.0
    %1397 = vmatprep.subr.mxu0 0.0
    %1398 = vmatpush1.msra.mxu0 0.0
    %1399 = vmatprep.subr.mxu0 0.0
    %1400 = vmatpush1.msra.mxu0 0.0
    %1401 = vmatprep.subr.mxu0 0.0
    %1402 = vmatpush1.msra.mxu0 0.0
    %1403 = vmatprep.subr.mxu0 0.0
    %1404 = vmatpush1.msra.mxu0 0.0
    %1405 = vmatprep.subr.mxu0 0.0
    %1406 = vmatpush1.msra.mxu0 0.0
    %1407 = vmatprep.subr.mxu0 0.0
    %1408 = vmatpush1.msra.mxu0 0.0
    %1409 = vmatprep.subr.mxu0 0.0
    %1410 = vmatpush1.msra.mxu0 0.0
    %1411 = vmatprep.subr.mxu0 0.0
    %1412 = vmatpush1.msra.mxu0 0.0
    %1413 = vmatprep.subr.mxu0 0.0
    %1414 = vmatpush1.msra.mxu0 0.0
    %1415 = vmatprep.mubr.f32.mxu0 0.0
    %v1416 = vand.u32 %v1034, 4294901760
    %1417 = vmatmul.mubr.f32.gmra.mrb[0].mxu0 %v1416
    %v1418 = vpop.f32.mrb[0].mxu0
    %v1419 = vadd.f32 %v1342, %v1418
    %v1420 = vpop.f32.mrb[0].mxu0
    %1421 = vdwg.mxu0
    %1422 = vmatprep.subr.mxu0 0.0
    %v1423 = vand.u32 %v517, 4294901760
    %1424 = vmatpush1.msra.mxu0 %v1423
    %1425 = vmatprep.subr.mxu0 0.0
    %v1426 = vand.u32 %v523, 4294901760
    %1427 = vmatpush1.msra.mxu0 %v1426
    %1428 = vmatprep.subr.mxu0 0.0
    %1429 = vmatpush1.msra.mxu0 0.0
    %1430 = vmatprep.subr.mxu0 0.0
    %1431 = vmatpush1.msra.mxu0 0.0
    %1432 = vmatprep.subr.mxu0 0.0
    %1433 = vmatpush1.msra.mxu0 0.0
    %1434 = vmatprep.subr.mxu0 0.0
    %1435 = vmatpush1.msra.mxu0 0.0
    %1436 = vmatprep.subr.mxu0 0.0
    %1437 = vmatpush1.msra.mxu0 0.0
    %1438 = vmatprep.subr.mxu0 0.0
    %1439 = vmatpush1.msra.mxu0 0.0
    %1440 = vmatprep.subr.mxu0 0.0
    %1441 = vmatpush1.msra.mxu0 0.0
    %1442 = vmatprep.subr.mxu0 0.0
    %1443 = vmatpush1.msra.mxu0 0.0
    %1444 = vmatprep.subr.mxu0 0.0
    %1445 = vmatpush1.msra.mxu0 0.0
    %1446 = vmatprep.subr.mxu0 0.0
    %1447 = vmatpush1.msra.mxu0 0.0
    %1448 = vmatprep.subr.mxu0 0.0
    %1449 = vmatpush1.msra.mxu0 0.0
    %1450 = vmatprep.subr.mxu0 0.0
    %1451 = vmatpush1.msra.mxu0 0.0
    %1452 = vmatprep.subr.mxu0 0.0
    %1453 = vmatpush1.msra.mxu0 0.0
    %1454 = vmatprep.subr.mxu0 0.0
    %1455 = vmatpush1.msra.mxu0 0.0
    %1456 = vmatprep.subr.mxu0 0.0
    %1457 = vmatpush1.msra.mxu0 0.0
    %1458 = vmatprep.subr.mxu0 0.0
    %1459 = vmatpush1.msra.mxu0 0.0
    %1460 = vmatprep.subr.mxu0 0.0
    %1461 = vmatpush1.msra.mxu0 0.0
    %1462 = vmatprep.subr.mxu0 0.0
    %1463 = vmatpush1.msra.mxu0 0.0
    %1464 = vmatprep.subr.mxu0 0.0
    %1465 = vmatpush1.msra.mxu0 0.0
    %1466 = vmatprep.subr.mxu0 0.0
    %1467 = vmatpush1.msra.mxu0 0.0
    %1468 = vmatprep.subr.mxu0 0.0
    %1469 = vmatpush1.msra.mxu0 0.0
    %1470 = vmatprep.subr.mxu0 0.0
    %1471 = vmatpush1.msra.mxu0 0.0
    %1472 = vmatprep.subr.mxu0 0.0
    %1473 = vmatpush1.msra.mxu0 0.0
    %1474 = vmatprep.subr.mxu0 0.0
    %1475 = vmatpush1.msra.mxu0 0.0
    %1476 = vmatprep.subr.mxu0 0.0
    %1477 = vmatpush1.msra.mxu0 0.0
    %1478 = vmatprep.subr.mxu0 0.0
    %1479 = vmatpush1.msra.mxu0 0.0
    %1480 = vmatprep.subr.mxu0 0.0
    %1481 = vmatpush1.msra.mxu0 0.0
    %1482 = vmatprep.subr.mxu0 0.0
    %1483 = vmatpush1.msra.mxu0 0.0
    %1484 = vmatprep.subr.mxu0 0.0
    %1485 = vmatpush1.msra.mxu0 0.0
    %1486 = vmatprep.subr.mxu0 0.0
    %1487 = vmatpush1.msra.mxu0 0.0
    %1488 = vmatprep.mubr.f32.mxu0 0.0
    %v1489 = vand.u32 %v1034, 4294901760
    %1490 = vmatmul.mubr.f32.gmra.mrb[0].mxu0 %v1489
    %v1491 = vpop.f32.mrb[0].mxu0
    %v1492 = vadd.f32 %v1419, %v1491
    %v1493 = vpop.f32.mrb[0].mxu0
    %1494 = vdwg.mxu0
    %v1496 = vsel %vm1032, %v1031, 0
    %1498 = vmatprep.subr.mxu0 0.0
    %v1499 = vand.u32 %v24, 4294901760
    %1500 = vmatpush1.msra.mxu0 %v1499
    %1501 = vmatprep.subr.mxu0 0.0
    %v1502 = vand.u32 %v25, 4294901760
    %1503 = vmatpush1.msra.mxu0 %v1502
    %1504 = vmatprep.subr.mxu0 0.0
    %1505 = vmatpush1.msra.mxu0 0.0
    %1506 = vmatprep.subr.mxu0 0.0
    %1507 = vmatpush1.msra.mxu0 0.0
    %1508 = vmatprep.subr.mxu0 0.0
    %1509 = vmatpush1.msra.mxu0 0.0
    %1510 = vmatprep.subr.mxu0 0.0
    %1511 = vmatpush1.msra.mxu0 0.0
    %1512 = vmatprep.subr.mxu0 0.0
    %1513 = vmatpush1.msra.mxu0 0.0
    %1514 = vmatprep.subr.mxu0 0.0
    %1515 = vmatpush1.msra.mxu0 0.0
    %1516 = vmatprep.subr.mxu0 0.0
    %1517 = vmatpush1.msra.mxu0 0.0
    %1518 = vmatprep.subr.mxu0 0.0
    %1519 = vmatpush1.msra.mxu0 0.0
    %1520 = vmatprep.subr.mxu0 0.0
    %1521 = vmatpush1.msra.mxu0 0.0
    %1522 = vmatprep.subr.mxu0 0.0
    %1523 = vmatpush1.msra.mxu0 0.0
    %1524 = vmatprep.subr.mxu0 0.0
    %1525 = vmatpush1.msra.mxu0 0.0
    %1526 = vmatprep.subr.mxu0 0.0
    %1527 = vmatpush1.msra.mxu0 0.0
    %1528 = vmatprep.subr.mxu0 0.0
    %1529 = vmatpush1.msra.mxu0 0.0
    %1530 = vmatprep.subr.mxu0 0.0
    %1531 = vmatpush1.msra.mxu0 0.0
    %1532 = vmatprep.subr.mxu0 0.0
    %1533 = vmatpush1.msra.mxu0 0.0
    %1534 = vmatprep.subr.mxu0 0.0
    %1535 = vmatpush1.msra.mxu0 0.0
    %1536 = vmatprep.subr.mxu0 0.0
    %1537 = vmatpush1.msra.mxu0 0.0
    %1538 = vmatprep.subr.mxu0 0.0
    %1539 = vmatpush1.msra.mxu0 0.0
    %1540 = vmatprep.subr.mxu0 0.0
    %1541 = vmatpush1.msra.mxu0 0.0
    %1542 = vmatprep.subr.mxu0 0.0
    %1543 = vmatpush1.msra.mxu0 0.0
    %1544 = vmatprep.subr.mxu0 0.0
    %1545 = vmatpush1.msra.mxu0 0.0
    %1546 = vmatprep.subr.mxu0 0.0
    %1547 = vmatpush1.msra.mxu0 0.0
    %1548 = vmatprep.subr.mxu0 0.0
    %1549 = vmatpush1.msra.mxu0 0.0
    %1550 = vmatprep.subr.mxu0 0.0
    %1551 = vmatpush1.msra.mxu0 0.0
    %1552 = vmatprep.subr.mxu0 0.0
    %1553 = vmatpush1.msra.mxu0 0.0
    %1554 = vmatprep.subr.mxu0 0.0
    %1555 = vmatpush1.msra.mxu0 0.0
    %1556 = vmatprep.subr.mxu0 0.0
    %1557 = vmatpush1.msra.mxu0 0.0
    %1558 = vmatprep.subr.mxu0 0.0
    %1559 = vmatpush1.msra.mxu0 0.0
    %1560 = vmatprep.subr.mxu0 0.0
    %1561 = vmatpush1.msra.mxu0 0.0
    %1562 = vmatprep.subr.mxu0 0.0
    %1563 = vmatpush1.msra.mxu0 0.0
    %1564 = vmatprep.mubr.f32.mxu0 0.0
    %v1565 = vand.u32 %v1496, 4294901760
    %v1566 = vsub.f32 %v1496, %v1565
    %v1567 = vand.u32 %v1566, 4294901760
    %v1568 = vsub.f32 %v1566, %v1567
    %v1569 = vand.u32 %v1568, 4294901760
    %1570 = vmatmul.mubr.f32.gmra.mrb[0].mxu0 %v1569
    %v1571 = vpop.f32.mrb[0].mxu0
    %v1572 = vadd.f32 %v1492, %v1571
    %v1573 = vpop.f32.mrb[0].mxu0
    %1574 = vdwg.mxu0
    %1575 = vmatprep.subr.mxu0 0.0
    %v1576 = vand.u32 %v24, 4294901760
    %v1577 = vsub.f32 %v24, %v1576
    %v1578 = vand.u32 %v1577, 4294901760
    %v1579 = vsub.f32 %v1577, %v1578
    %v1580 = vand.u32 %v1579, 4294901760
    %1581 = vmatpush1.msra.mxu0 %v1580
    %1582 = vmatprep.subr.mxu0 0.0
    %v1583 = vand.u32 %v25, 4294901760
    %v1584 = vsub.f32 %v25, %v1583
    %v1585 = vand.u32 %v1584, 4294901760
    %v1586 = vsub.f32 %v1584, %v1585
    %v1587 = vand.u32 %v1586, 4294901760
    %1588 = vmatpush1.msra.mxu0 %v1587
    %1589 = vmatprep.subr.mxu0 0.0
    %1590 = vmatpush1.msra.mxu0 0.0
    %1591 = vmatprep.subr.mxu0 0.0
    %1592 = vmatpush1.msra.mxu0 0.0
    %1593 = vmatprep.subr.mxu0 0.0
    %1594 = vmatpush1.msra.mxu0 0.0
    %1595 = vmatprep.subr.mxu0 0.0
    %1596 = vmatpush1.msra.mxu0 0.0
    %1597 = vmatprep.subr.mxu0 0.0
    %1598 = vmatpush1.msra.mxu0 0.0
    %1599 = vmatprep.subr.mxu0 0.0
    %1600 = vmatpush1.msra.mxu0 0.0
    %1601 = vmatprep.subr.mxu0 0.0
    %1602 = vmatpush1.msra.mxu0 0.0
    %1603 = vmatprep.subr.mxu0 0.0
    %1604 = vmatpush1.msra.mxu0 0.0
    %1605 = vmatprep.subr.mxu0 0.0
    %1606 = vmatpush1.msra.mxu0 0.0
    %1607 = vmatprep.subr.mxu0 0.0
    %1608 = vmatpush1.msra.mxu0 0.0
    %1609 = vmatprep.subr.mxu0 0.0
    %1610 = vmatpush1.msra.mxu0 0.0
    %1611 = vmatprep.subr.mxu0 0.0
    %1612 = vmatpush1.msra.mxu0 0.0
    %1613 = vmatprep.subr.mxu0 0.0
    %1614 = vmatpush1.msra.mxu0 0.0
    %1615 = vmatprep.subr.mxu0 0.0
    %1616 = vmatpush1.msra.mxu0 0.0
    %1617 = vmatprep.subr.mxu0 0.0
    %1618 = vmatpush1.msra.mxu0 0.0
    %1619 = vmatprep.subr.mxu0 0.0
    %1620 = vmatpush1.msra.mxu0 0.0
    %1621 = vmatprep.subr.mxu0 0.0
    %1622 = vmatpush1.msra.mxu0 0.0
    %1623 = vmatprep.subr.mxu0 0.0
    %1624 = vmatpush1.msra.mxu0 0.0
    %1625 = vmatprep.subr.mxu0 0.0
    %1626 = vmatpush1.msra.mxu0 0.0
    %1627 = vmatprep.subr.mxu0 0.0
    %1628 = vmatpush1.msra.mxu0 0.0
    %1629 = vmatprep.subr.mxu0 0.0
    %1630 = vmatpush1.msra.mxu0 0.0
    %1631 = vmatprep.subr.mxu0 0.0
    %1632 = vmatpush1.msra.mxu0 0.0
    %1633 = vmatprep.subr.mxu0 0.0
    %1634 = vmatpush1.msra.mxu0 0.0
    %1635 = vmatprep.subr.mxu0 0.0
    %1636 = vmatpush1.msra.mxu0 0.0
    %1637 = vmatprep.subr.mxu0 0.0
    %1638 = vmatpush1.msra.mxu0 0.0
    %1639 = vmatprep.subr.mxu0 0.0
    %1640 = vmatpush1.msra.mxu0 0.0
    %1641 = vmatprep.subr.mxu0 0.0
    %1642 = vmatpush1.msra.mxu0 0.0
    %1643 = vmatprep.subr.mxu0 0.0
    %1644 = vmatpush1.msra.mxu0 0.0
    %1645 = vmatprep.subr.mxu0 0.0
    %1646 = vmatpush1.msra.mxu0 0.0
    %1647 = vmatprep.subr.mxu0 0.0
    %1648 = vmatpush1.msra.mxu0 0.0
    %1649 = vmatprep.mubr.f32.mxu0 0.0
    %v1650 = vand.u32 %v1496, 4294901760
    %1651 = vmatmul.mubr.f32.gmra.mrb[0].mxu0 %v1650
    %v1652 = vpop.f32.mrb[0].mxu0
    %v1653 = vadd.f32 %v1572, %v1652
    %v1654 = vpop.f32.mrb[0].mxu0
    %1655 = vdwg.mxu0
    %1656 = vmatprep.subr.mxu0 0.0
    %v1657 = vand.u32 %v24, 4294901760
    %v1658 = vsub.f32 %v24, %v1657
    %1659 = vmatpush1.msra.mxu0 %v1658
    %1660 = vmatprep.subr.mxu0 0.0
    %v1661 = vand.u32 %v25, 4294901760
    %v1662 = vsub.f32 %v25, %v1661
    %1663 = vmatpush1.msra.mxu0 %v1662
    %1664 = vmatprep.subr.mxu0 0.0
    %1665 = vmatpush1.msra.mxu0 0.0
    %1666 = vmatprep.subr.mxu0 0.0
    %1667 = vmatpush1.msra.mxu0 0.0
    %1668 = vmatprep.subr.mxu0 0.0
    %1669 = vmatpush1.msra.mxu0 0.0
    %1670 = vmatprep.subr.mxu0 0.0
    %1671 = vmatpush1.msra.mxu0 0.0
    %1672 = vmatprep.subr.mxu0 0.0
    %1673 = vmatpush1.msra.mxu0 0.0
    %1674 = vmatprep.subr.mxu0 0.0
    %1675 = vmatpush1.msra.mxu0 0.0
    %1676 = vmatprep.subr.mxu0 0.0
    %1677 = vmatpush1.msra.mxu0 0.0
    %1678 = vmatprep.subr.mxu0 0.0
    %1679 = vmatpush1.msra.mxu0 0.0
    %1680 = vmatprep.subr.mxu0 0.0
    %1681 = vmatpush1.msra.mxu0 0.0
    %1682 = vmatprep.subr.mxu0 0.0
    %1683 = vmatpush1.msra.mxu0 0.0
    %1684 = vmatprep.subr.mxu0 0.0
    %1685 = vmatpush1.msra.mxu0 0.0
    %1686 = vmatprep.subr.mxu0 0.0
    %1687 = vmatpush1.msra.mxu0 0.0
    %1688 = vmatprep.subr.mxu0 0.0
    %1689 = vmatpush1.msra.mxu0 0.0
    %1690 = vmatprep.subr.mxu0 0.0
    %1691 = vmatpush1.msra.mxu0 0.0
    %1692 = vmatprep.subr.mxu0 0.0
    %1693 = vmatpush1.msra.mxu0 0.0
    %1694 = vmatprep.subr.mxu0 0.0
    %1695 = vmatpush1.msra.mxu0 0.0
    %1696 = vmatprep.subr.mxu0 0.0
    %1697 = vmatpush1.msra.mxu0 0.0
    %1698 = vmatprep.subr.mxu0 0.0
    %1699 = vmatpush1.msra.mxu0 0.0
    %1700 = vmatprep.subr.mxu0 0.0
    %1701 = vmatpush1.msra.mxu0 0.0
    %1702 = vmatprep.subr.mxu0 0.0
    %1703 = vmatpush1.msra.mxu0 0.0
    %1704 = vmatprep.subr.mxu0 0.0
    %1705 = vmatpush1.msra.mxu0 0.0
    %1706 = vmatprep.subr.mxu0 0.0
    %1707 = vmatpush1.msra.mxu0 0.0
    %1708 = vmatprep.subr.mxu0 0.0
    %1709 = vmatpush1.msra.mxu0 0.0
    %1710 = vmatprep.subr.mxu0 0.0
    %1711 = vmatpush1.msra.mxu0 0.0
    %1712 = vmatprep.subr.mxu0 0.0
    %1713 = vmatpush1.msra.mxu0 0.0
    %1714 = vmatprep.subr.mxu0 0.0
    %1715 = vmatpush1.msra.mxu0 0.0
    %1716 = vmatprep.subr.mxu0 0.0
    %1717 = vmatpush1.msra.mxu0 0.0
    %1718 = vmatprep.subr.mxu0 0.0
    %1719 = vmatpush1.msra.mxu0 0.0
    %1720 = vmatprep.subr.mxu0 0.0
    %1721 = vmatpush1.msra.mxu0 0.0
    %1722 = vmatprep.subr.mxu0 0.0
    %1723 = vmatpush1.msra.mxu0 0.0
    %1724 = vmatprep.mubr.f32.mxu0 0.0
    %v1725 = vand.u32 %v1496, 4294901760
    %v1726 = vsub.f32 %v1496, %v1725
    %1727 = vmatmul.mubr.f32.gmra.mrb[0].mxu0 %v1726
    %v1728 = vpop.f32.mrb[0].mxu0
    %v1729 = vadd.f32 %v1653, %v1728
    %v1730 = vpop.f32.mrb[0].mxu0
    %1731 = vdwg.mxu0
    %1732 = vmatprep.subr.mxu0 0.0
    %v1733 = vand.u32 %v24, 4294901760
    %1734 = vmatpush1.msra.mxu0 %v1733
    %1735 = vmatprep.subr.mxu0 0.0
    %v1736 = vand.u32 %v25, 4294901760
    %1737 = vmatpush1.msra.mxu0 %v1736
    %1738 = vmatprep.subr.mxu0 0.0
    %1739 = vmatpush1.msra.mxu0 0.0
    %1740 = vmatprep.subr.mxu0 0.0
    %1741 = vmatpush1.msra.mxu0 0.0
    %1742 = vmatprep.subr.mxu0 0.0
    %1743 = vmatpush1.msra.mxu0 0.0
    %1744 = vmatprep.subr.mxu0 0.0
    %1745 = vmatpush1.msra.mxu0 0.0
    %1746 = vmatprep.subr.mxu0 0.0
    %1747 = vmatpush1.msra.mxu0 0.0
    %1748 = vmatprep.subr.mxu0 0.0
    %1749 = vmatpush1.msra.mxu0 0.0
    %1750 = vmatprep.subr.mxu0 0.0
    %1751 = vmatpush1.msra.mxu0 0.0
    %1752 = vmatprep.subr.mxu0 0.0
    %1753 = vmatpush1.msra.mxu0 0.0
    %1754 = vmatprep.subr.mxu0 0.0
    %1755 = vmatpush1.msra.mxu0 0.0
    %1756 = vmatprep.subr.mxu0 0.0
    %1757 = vmatpush1.msra.mxu0 0.0
    %1758 = vmatprep.subr.mxu0 0.0
    %1759 = vmatpush1.msra.mxu0 0.0
    %1760 = vmatprep.subr.mxu0 0.0
    %1761 = vmatpush1.msra.mxu0 0.0
    %1762 = vmatprep.subr.mxu0 0.0
    %1763 = vmatpush1.msra.mxu0 0.0
    %1764 = vmatprep.subr.mxu0 0.0
    %1765 = vmatpush1.msra.mxu0 0.0
    %1766 = vmatprep.subr.mxu0 0.0
    %1767 = vmatpush1.msra.mxu0 0.0
    %1768 = vmatprep.subr.mxu0 0.0
    %1769 = vmatpush1.msra.mxu0 0.0
    %1770 = vmatprep.subr.mxu0 0.0
    %1771 = vmatpush1.msra.mxu0 0.0
    %1772 = vmatprep.subr.mxu0 0.0
    %1773 = vmatpush1.msra.mxu0 0.0
    %1774 = vmatprep.subr.mxu0 0.0
    %1775 = vmatpush1.msra.mxu0 0.0
    %1776 = vmatprep.subr.mxu0 0.0
    %1777 = vmatpush1.msra.mxu0 0.0
    %1778 = vmatprep.subr.mxu0 0.0
    %1779 = vmatpush1.msra.mxu0 0.0
    %1780 = vmatprep.subr.mxu0 0.0
    %1781 = vmatpush1.msra.mxu0 0.0
    %1782 = vmatprep.subr.mxu0 0.0
    %1783 = vmatpush1.msra.mxu0 0.0
    %1784 = vmatprep.subr.mxu0 0.0
    %1785 = vmatpush1.msra.mxu0 0.0
    %1786 = vmatprep.subr.mxu0 0.0
    %1787 = vmatpush1.msra.mxu0 0.0
    %1788 = vmatprep.subr.mxu0 0.0
    %1789 = vmatpush1.msra.mxu0 0.0
    %1790 = vmatprep.subr.mxu0 0.0
    %1791 = vmatpush1.msra.mxu0 0.0
    %1792 = vmatprep.subr.mxu0 0.0
    %1793 = vmatpush1.msra.mxu0 0.0
    %1794 = vmatprep.subr.mxu0 0.0
    %1795 = vmatpush1.msra.mxu0 0.0
    %1796 = vmatprep.subr.mxu0 0.0
    %1797 = vmatpush1.msra.mxu0 0.0
    %1798 = vmatprep.mubr.f32.mxu0 0.0
    %v1799 = vand.u32 %v1496, 4294901760
    %v1800 = vsub.f32 %v1496, %v1799
    %v1801 = vand.u32 %v1800, 4294901760
    %1802 = vmatmul.mubr.f32.gmra.mrb[0].mxu0 %v1801
    %v1803 = vpop.f32.mrb[0].mxu0
    %v1804 = vadd.f32 %v1729, %v1803
    %v1805 = vpop.f32.mrb[0].mxu0
    %1806 = vdwg.mxu0
    %1807 = vmatprep.subr.mxu0 0.0
    %v1808 = vand.u32 %v24, 4294901760
    %v1809 = vsub.f32 %v24, %v1808
    %v1810 = vand.u32 %v1809, 4294901760
    %1811 = vmatpush1.msra.mxu0 %v1810
    %1812 = vmatprep.subr.mxu0 0.0
    %v1813 = vand.u32 %v25, 4294901760
    %v1814 = vsub.f32 %v25, %v1813
    %v1815 = vand.u32 %v1814, 4294901760
    %1816 = vmatpush1.msra.mxu0 %v1815
    %1817 = vmatprep.subr.mxu0 0.0
    %1818 = vmatpush1.msra.mxu0 0.0
    %1819 = vmatprep.subr.mxu0 0.0
    %1820 = vmatpush1.msra.mxu0 0.0
    %1821 = vmatprep.subr.mxu0 0.0
    %1822 = vmatpush1.msra.mxu0 0.0
    %1823 = vmatprep.subr.mxu0 0.0
    %1824 = vmatpush1.msra.mxu0 0.0
    %1825 = vmatprep.subr.mxu0 0.0
    %1826 = vmatpush1.msra.mxu0 0.0
    %1827 = vmatprep.subr.mxu0 0.0
    %1828 = vmatpush1.msra.mxu0 0.0
    %1829 = vmatprep.subr.mxu0 0.0
    %1830 = vmatpush1.msra.mxu0 0.0
    %1831 = vmatprep.subr.mxu0 0.0
    %1832 = vmatpush1.msra.mxu0 0.0
    %1833 = vmatprep.subr.mxu0 0.0
    %1834 = vmatpush1.msra.mxu0 0.0
    %1835 = vmatprep.subr.mxu0 0.0
    %1836 = vmatpush1.msra.mxu0 0.0
    %1837 = vmatprep.subr.mxu0 0.0
    %1838 = vmatpush1.msra.mxu0 0.0
    %1839 = vmatprep.subr.mxu0 0.0
    %1840 = vmatpush1.msra.mxu0 0.0
    %1841 = vmatprep.subr.mxu0 0.0
    %1842 = vmatpush1.msra.mxu0 0.0
    %1843 = vmatprep.subr.mxu0 0.0
    %1844 = vmatpush1.msra.mxu0 0.0
    %1845 = vmatprep.subr.mxu0 0.0
    %1846 = vmatpush1.msra.mxu0 0.0
    %1847 = vmatprep.subr.mxu0 0.0
    %1848 = vmatpush1.msra.mxu0 0.0
    %1849 = vmatprep.subr.mxu0 0.0
    %1850 = vmatpush1.msra.mxu0 0.0
    %1851 = vmatprep.subr.mxu0 0.0
    %1852 = vmatpush1.msra.mxu0 0.0
    %1853 = vmatprep.subr.mxu0 0.0
    %1854 = vmatpush1.msra.mxu0 0.0
    %1855 = vmatprep.subr.mxu0 0.0
    %1856 = vmatpush1.msra.mxu0 0.0
    %1857 = vmatprep.subr.mxu0 0.0
    %1858 = vmatpush1.msra.mxu0 0.0
    %1859 = vmatprep.subr.mxu0 0.0
    %1860 = vmatpush1.msra.mxu0 0.0
    %1861 = vmatprep.subr.mxu0 0.0
    %1862 = vmatpush1.msra.mxu0 0.0
    %1863 = vmatprep.subr.mxu0 0.0
    %1864 = vmatpush1.msra.mxu0 0.0
    %1865 = vmatprep.subr.mxu0 0.0
    %1866 = vmatpush1.msra.mxu0 0.0
    %1867 = vmatprep.subr.mxu0 0.0
    %1868 = vmatpush1.msra.mxu0 0.0
    %1869 = vmatprep.subr.mxu0 0.0
    %1870 = vmatpush1.msra.mxu0 0.0
    %1871 = vmatprep.subr.mxu0 0.0
    %1872 = vmatpush1.msra.mxu0 0.0
    %1873 = vmatprep.subr.mxu0 0.0
    %1874 = vmatpush1.msra.mxu0 0.0
    %1875 = vmatprep.subr.mxu0 0.0
    %1876 = vmatpush1.msra.mxu0 0.0
    %1877 = vmatprep.mubr.f32.mxu0 0.0
    %v1878 = vand.u32 %v1496, 4294901760
    %1879 = vmatmul.mubr.f32.gmra.mrb[0].mxu0 %v1878
    %v1880 = vpop.f32.mrb[0].mxu0
    %v1881 = vadd.f32 %v1804, %v1880
    %v1882 = vpop.f32.mrb[0].mxu0
    %1883 = vdwg.mxu0
    %1884 = vmatprep.subr.mxu0 0.0
    %v1885 = vand.u32 %v24, 4294901760
    %1886 = vmatpush1.msra.mxu0 %v1885
    %1887 = vmatprep.subr.mxu0 0.0
    %v1888 = vand.u32 %v25, 4294901760
    %1889 = vmatpush1.msra.mxu0 %v1888
    %1890 = vmatprep.subr.mxu0 0.0
    %1891 = vmatpush1.msra.mxu0 0.0
    %1892 = vmatprep.subr.mxu0 0.0
    %1893 = vmatpush1.msra.mxu0 0.0
    %1894 = vmatprep.subr.mxu0 0.0
    %1895 = vmatpush1.msra.mxu0 0.0
    %1896 = vmatprep.subr.mxu0 0.0
    %1897 = vmatpush1.msra.mxu0 0.0
    %1898 = vmatprep.subr.mxu0 0.0
    %1899 = vmatpush1.msra.mxu0 0.0
    %1900 = vmatprep.subr.mxu0 0.0
    %1901 = vmatpush1.msra.mxu0 0.0
    %1902 = vmatprep.subr.mxu0 0.0
    %1903 = vmatpush1.msra.mxu0 0.0
    %1904 = vmatprep.subr.mxu0 0.0
    %1905 = vmatpush1.msra.mxu0 0.0
    %1906 = vmatprep.subr.mxu0 0.0
    %1907 = vmatpush1.msra.mxu0 0.0
    %1908 = vmatprep.subr.mxu0 0.0
    %1909 = vmatpush1.msra.mxu0 0.0
    %1910 = vmatprep.subr.mxu0 0.0
    %1911 = vmatpush1.msra.mxu0 0.0
    %1912 = vmatprep.subr.mxu0 0.0
    %1913 = vmatpush1.msra.mxu0 0.0
    %1914 = vmatprep.subr.mxu0 0.0
    %1915 = vmatpush1.msra.mxu0 0.0
    %1916 = vmatprep.subr.mxu0 0.0
    %1917 = vmatpush1.msra.mxu0 0.0
    %1918 = vmatprep.subr.mxu0 0.0
    %1919 = vmatpush1.msra.mxu0 0.0
    %1920 = vmatprep.subr.mxu0 0.0
    %1921 = vmatpush1.msra.mxu0 0.0
    %1922 = vmatprep.subr.mxu0 0.0
    %1923 = vmatpush1.msra.mxu0 0.0
    %1924 = vmatprep.subr.mxu0 0.0
    %1925 = vmatpush1.msra.mxu0 0.0
    %1926 = vmatprep.subr.mxu0 0.0
    %1927 = vmatpush1.msra.mxu0 0.0
    %1928 = vmatprep.subr.mxu0 0.0
    %1929 = vmatpush1.msra.mxu0 0.0
    %1930 = vmatprep.subr.mxu0 0.0
    %1931 = vmatpush1.msra.mxu0 0.0
    %1932 = vmatprep.subr.mxu0 0.0
    %1933 = vmatpush1.msra.mxu0 0.0
    %1934 = vmatprep.subr.mxu0 0.0
    %1935 = vmatpush1.msra.mxu0 0.0
    %1936 = vmatprep.subr.mxu0 0.0
    %1937 = vmatpush1.msra.mxu0 0.0
    %1938 = vmatprep.subr.mxu0 0.0
    %1939 = vmatpush1.msra.mxu0 0.0
    %1940 = vmatprep.subr.mxu0 0.0
    %1941 = vmatpush1.msra.mxu0 0.0
    %1942 = vmatprep.subr.mxu0 0.0
    %1943 = vmatpush1.msra.mxu0 0.0
    %1944 = vmatprep.subr.mxu0 0.0
    %1945 = vmatpush1.msra.mxu0 0.0
    %1946 = vmatprep.subr.mxu0 0.0
    %1947 = vmatpush1.msra.mxu0 0.0
    %1948 = vmatprep.subr.mxu0 0.0
    %1949 = vmatpush1.msra.mxu0 0.0
    %1950 = vmatprep.mubr.f32.mxu0 0.0
    %v1951 = vand.u32 %v1496, 4294901760
    %1952 = vmatmul.mubr.f32.gmra.mrb[0].mxu0 %v1951
    %v1953 = vpop.f32.mrb[0].mxu0
    %v1954 = vadd.f32 %v1881, %v1953
    %v1955 = vpop.f32.mrb[0].mxu0
    %1956 = vdwg.mxu0
    %v1959 = vunpack.c.l.s4 1966171168
    %v1960 = vunpack.c.0.s8 %v1959
    %v1961 = vlaneseq
    %v1962 = vshrl.u32 %v1961, 7
    %v1963 = vsub.s32 %v1960, %v1962
    %v1964 = vrot.slane %v1954, %v1963
    %v1965 = vcombine.high %v1964, %v1964
    %v1967 = vunpack.c.l.s4 1966171168
    %v1968 = vunpack.c.0.s8 %v1967
    %v1969 = vlaneseq
    %v1970 = vshrl.u32 %v1969, 7
    %v1971 = vsub.s32 %v1968, %v1970
    %v1972 = vrot.slane %v1964, %v1971
    %v1974 = vunpack.c.l.s4 1966171168
    %v1975 = vunpack.c.0.s8 %v1974
    %v1976 = vlaneseq
    %v1977 = vshrl.u32 %v1976, 7
    %v1978 = vsub.s32 %v1975, %v1977
    %v1979 = vrot.slane %v1965, %v1978
    %v1980 = vcombine.high %v1972, %v1972
    %v1981 = vcombine.high %v1979, %v1979
    %v1982 = vlaneseq
    %v1983 = vshrl.u32 %v1982, 7
    %v1984 = vsub.s32 0, %v1983
    %v1985 = vrot.slane %v1972, %v1984
    %v1986 = vlaneseq
    %v1987 = vshrl.u32 %v1986, 7
    %v1988 = vsub.s32 0, %v1987
    %v1989 = vrot.slane %v1979, %v1988
    %v1990 = vlaneseq
    %v1991 = vshrl.u32 %v1990, 7
    %v1992 = vsub.s32 0, %v1991
    %v1993 = vrot.slane %v1980, %v1992
    %v1994 = vlaneseq
    %v1995 = vshrl.u32 %v1994, 7
    %v1996 = vsub.s32 0, %v1995
    %v1997 = vrot.slane %v1981, %v1996
    %v2002 = vadd.f32 %v1985, %v1013
    %v2003 = vadd.f32 %v1985, %v1019
    %v2004 = vadd.f32 %v1989, %v1013
    %v2005 = vadd.f32 %v1989, %v1019
    %v2006 = vadd.f32 %v1993, %v1013
    %v2007 = vadd.f32 %v1993, %v1019
    %v2008 = vadd.f32 %v1997, %v1013
    %v2009 = vadd.f32 %v1997, %v1019
    %v2010 = vmul.f32 %v2002, 0.01
    %v2011 = vmul.f32 %v2003, 0.01
    %v2012 = vmul.f32 %v2004, 0.01
    %v2013 = vmul.f32 %v2005, 0.01
    %v2014 = vmul.f32 %v2006, 0.01
    %v2015 = vmul.f32 %v2007, 0.01
    %v2016 = vmul.f32 %v2008, 0.01
    %v2017 = vmul.f32 %v2009, 0.01
    %v2018 = vmax.f32 %v2002, %v2010
    %v2019 = vmax.f32 %v2003, %v2011
    %v2020 = vmax.f32 %v2004, %v2012
    %v2021 = vmax.f32 %v2005, %v2013
    %v2022 = vmax.f32 %v2006, %v2014
    %v2023 = vmax.f32 %v2007, %v2015
    %v2024 = vmax.f32 %v2008, %v2016
    %v2025 = vmax.f32 %v2009, %v2017
    %v2026 = vld [vmem:[%s5] sm:$0x1]
    %v2028 = vlaneseq
    %v2029 = vshrl.u32 %v2028, 7
    %v2030 = vsub.s32 0, %v2029
    %v2031 = vrot.slane %v2026, %v2030
    %v2033 = vmul.f32 %v2018, %v2031
    %v2034 = vmul.f32 %v2019, %v2031
    %v2035 = vmul.f32 %v2020, %v2031
    %v2036 = vmul.f32 %v2021, %v2031
    %v2037 = vmul.f32 %v2022, %v2031
    %v2038 = vmul.f32 %v2023, %v2031
    %v2039 = vmul.f32 %v2024, %v2031
    %v2040 = vmul.f32 %v2025, %v2031
    %2041 = vadd.xlane.f32.xlu0 %v2033
    %v2042 = vpop.xlane.xlu0 %2041
    %2043 = vadd.xlane.f32.xlu0 %v2034
    %v2044 = vpop.xlane.xlu0 %2043
    %2045 = vadd.xlane.f32.xlu0 %v2035
    %v2046 = vpop.xlane.xlu0 %2045
    %2047 = vadd.xlane.f32.xlu0 %v2036
    %v2048 = vpop.xlane.xlu0 %2047
    %2049 = vadd.xlane.f32.xlu0 %v2037
    %v2050 = vpop.xlane.xlu0 %2049
    %2051 = vadd.xlane.f32.xlu0 %v2038
    %v2052 = vpop.xlane.xlu0 %2051
    %2053 = vadd.xlane.f32.xlu0 %v2039
    %v2054 = vpop.xlane.xlu0 %2053
    %2055 = vadd.xlane.f32.xlu0 %v2040
    %v2056 = vpop.xlane.xlu0 %2055
    %v2065 = vlaneseq
    %v2066 = vshrl.u32 %v2065, 7
    %v2067 = vsub.s32 %v1024, %v2066
    %v2068 = vrot.slane %v2042, %v2067
    %v2069 = vadd.s32 %v1024, 4294967288
    %v2070 = vlaneseq
    %v2071 = vshrl.u32 %v2070, 7
    %v2072 = vsub.s32 %v2069, %v2071
    %v2073 = vrot.slane %v2044, %v2072
    %vm2074 = vcmask 130112
    %v2075 = vsel %vm2074, %v2073, %v2068
    %v2076 = vlaneseq
    %v2077 = vshrl.u32 %v2076, 7
    %v2078 = vsub.s32 %v1024, %v2077
    %v2079 = vrot.slane %v2046, %v2078
    %v2080 = vlaneseq
    %v2081 = vshrl.u32 %v2080, 7
    %v2082 = vsub.s32 %v2069, %v2081
    %v2083 = vrot.slane %v2048, %v2082
    %v2084 = vsel %vm2074, %v2083, %v2079
    %v2085 = vlaneseq
    %v2086 = vshrl.u32 %v2085, 7
    %v2087 = vsub.s32 %v1024, %v2086
    %v2088 = vrot.slane %v2050, %v2087
    %v2089 = vlaneseq
    %v2090 = vshrl.u32 %v2089, 7
    %v2091 = vsub.s32 %v2069, %v2090
    %v2092 = vrot.slane %v2052, %v2091
    %v2093 = vsel %vm2074, %v2092, %v2088
    %v2094 = vlaneseq
    %v2095 = vshrl.u32 %v2094, 7
    %v2096 = vsub.s32 %v1024, %v2095
    %v2097 = vrot.slane %v2054, %v2096
    %v2098 = vlaneseq
    %v2099 = vshrl.u32 %v2098, 7
    %v2100 = vsub.s32 %v2069, %v2099
    %v2101 = vrot.slane %v2056, %v2100
    %v2102 = vsel %vm2074, %v2101, %v2097
    %vm2103 = vcmask 1041409
    %v2104 = vsel %vm2103, %v2084, %v2075
    %vm2105 = vcmask 1042434
    %v2106 = vsel %vm2105, %v2093, %v2104
    %vm2107 = vcmask 1043459
    %v2108 = vsel %vm2107, %v2102, %v2106
    %vm2110 = vcmask 125952
    %v2111 = vsel %vm2110, %v2108, -inf
    %2112 = vmax.xlane.f32.xlu0 %v2111
    %v2113 = vpop.xlane.xlu0 %2112
    %v2115 = vlaneseq
    %v2116 = vshrl.u32 %v2115, 7
    %v2117 = vsub.s32 0, %v2116
    %v2118 = vrot.slane %v2113, %v2117
    %v2119 = vlaneseq
    %v2120 = vshrl.u32 %v2119, 7
    %v2121 = vsub.s32 1, %v2120
    %v2122 = vrot.slane %v2113, %v2121
    %v2123 = vlaneseq
    %v2124 = vshrl.u32 %v2123, 7
    %v2125 = vsub.s32 2, %v2124
    %v2126 = vrot.slane %v2113, %v2125
    %v2127 = vlaneseq
    %v2128 = vshrl.u32 %v2127, 7
    %v2129 = vsub.s32 3, %v2128
    %v2130 = vrot.slane %v2113, %v2129
    %v2135 = vsub.f32 %v2042, %v2118
    %v2136 = vsub.f32 %v2044, %v2118
    %v2137 = vsub.f32 %v2046, %v2122
    %v2138 = vsub.f32 %v2048, %v2122
    %v2139 = vsub.f32 %v2050, %v2126
    %v2140 = vsub.f32 %v2052, %v2126
    %v2141 = vsub.f32 %v2054, %v2130
    %v2142 = vsub.f32 %v2056, %v2130
    %v2143 = vmul.f32 %v2135, 1.442695
    %v2144 = vpow.pop %v2143
    %v2145 = vmul.f32 %v2136, 1.442695
    %v2146 = vpow.pop %v2145
    %v2147 = vmul.f32 %v2137, 1.442695
    %v2148 = vpow.pop %v2147
    %v2149 = vmul.f32 %v2138, 1.442695
    %v2150 = vpow.pop %v2149
    %v2151 = vmul.f32 %v2139, 1.442695
    %v2152 = vpow.pop %v2151
    %v2153 = vmul.f32 %v2140, 1.442695
    %v2154 = vpow.pop %v2153
    %v2155 = vmul.f32 %v2141, 1.442695
    %v2156 = vpow.pop %v2155
    %v2157 = vmul.f32 %v2142, 1.442695
    %v2158 = vpow.pop %v2157
    %2167 = vset.pattern.permute.xlu0 0
    %2168 = vperm.xlu0 %2167, %v2144
    %v2169 = vpop.permute.xlu0 %2168
    %2170 = vset.pattern.permute.xlu0 0
    %2171 = vperm.xlu0 %2170, %v2146
    %v2172 = vpop.permute.xlu0 %2171
    %2173 = vset.pattern.permute.xlu0 0
    %2174 = vperm.xlu0 %2173, %v2148
    %v2175 = vpop.permute.xlu0 %2174
    %2176 = vset.pattern.permute.xlu0 0
    %2177 = vperm.xlu0 %2176, %v2150
    %v2178 = vpop.permute.xlu0 %2177
    %2179 = vset.pattern.permute.xlu0 0
    %2180 = vperm.xlu0 %2179, %v2152
    %v2181 = vpop.permute.xlu0 %2180
    %2182 = vset.pattern.permute.xlu0 0
    %2183 = vperm.xlu0 %2182, %v2154
    %v2184 = vpop.permute.xlu0 %2183
    %2185 = vset.pattern.permute.xlu0 0
    %2186 = vperm.xlu0 %2185, %v2156
    %v2187 = vpop.permute.xlu0 %2186
    %2188 = vset.pattern.permute.xlu0 0
    %2189 = vperm.xlu0 %2188, %v2158
    %v2190 = vpop.permute.xlu0 %2189
    %v2191 = vlaneseq
    %v2192 = vshrl.u32 %v2191, 7
    %v2193 = vsub.s32 %v1024, %v2192
    %v2194 = vrot.slane %v2169, %v2193
    %v2195 = vlaneseq
    %v2196 = vshrl.u32 %v2195, 7
    %v2197 = vsub.s32 %v2069, %v2196
    %v2198 = vrot.slane %v2172, %v2197
    %v2199 = vsel %vm2074, %v2198, %v2194
    %v2200 = vlaneseq
    %v2201 = vshrl.u32 %v2200, 7
    %v2202 = vsub.s32 %v1024, %v2201
    %v2203 = vrot.slane %v2175, %v2202
    %v2204 = vlaneseq
    %v2205 = vshrl.u32 %v2204, 7
    %v2206 = vsub.s32 %v2069, %v2205
    %v2207 = vrot.slane %v2178, %v2206
    %v2208 = vsel %vm2074, %v2207, %v2203
    %v2209 = vlaneseq
    %v2210 = vshrl.u32 %v2209, 7
    %v2211 = vsub.s32 %v1024, %v2210
    %v2212 = vrot.slane %v2181, %v2211
    %v2213 = vlaneseq
    %v2214 = vshrl.u32 %v2213, 7
    %v2215 = vsub.s32 %v2069, %v2214
    %v2216 = vrot.slane %v2184, %v2215
    %v2217 = vsel %vm2074, %v2216, %v2212
    %v2218 = vlaneseq
    %v2219 = vshrl.u32 %v2218, 7
    %v2220 = vsub.s32 %v1024, %v2219
    %v2221 = vrot.slane %v2187, %v2220
    %v2222 = vlaneseq
    %v2223 = vshrl.u32 %v2222, 7
    %v2224 = vsub.s32 %v2069, %v2223
    %v2225 = vrot.slane %v2190, %v2224
    %v2226 = vsel %vm2074, %v2225, %v2221
    %v2227 = vsel %vm2103, %v2208, %v2199
    %v2228 = vsel %vm2105, %v2217, %v2227
    %v2229 = vsel %vm2107, %v2226, %v2228
    %v2231 = vsel %vm2110, %v2229, 0.0
    %2232 = vadd.xlane.f32.xlu0 %v2231
    %v2233 = vpop.xlane.xlu0 %2232
    %v2234 = vlog2.pop %v2233
    %v2235 = vmul.f32 %v2234, 0.6931472
    %v2237 = vlaneseq
    %v2238 = vshrl.u32 %v2237, 7
    %v2239 = vsub.s32 0, %v2238
    %v2240 = vrot.slane %v2235, %v2239
    %v2241 = vlaneseq
    %v2242 = vshrl.u32 %v2241, 7
    %v2243 = vsub.s32 1, %v2242
    %v2244 = vrot.slane %v2235, %v2243
    %v2245 = vlaneseq
    %v2246 = vshrl.u32 %v2245, 7
    %v2247 = vsub.s32 2, %v2246
    %v2248 = vrot.slane %v2235, %v2247
    %v2249 = vlaneseq
    %v2250 = vshrl.u32 %v2249, 7
    %v2251 = vsub.s32 3, %v2250
    %v2252 = vrot.slane %v2235, %v2251
    %v2257 = vsub.f32 %v2135, %v2240
    %v2258 = vsub.f32 %v2136, %v2240
    %v2259 = vsub.f32 %v2137, %v2244
    %v2260 = vsub.f32 %v2138, %v2244
    %v2261 = vsub.f32 %v2139, %v2248
    %v2262 = vsub.f32 %v2140, %v2248
    %v2263 = vsub.f32 %v2141, %v2252
    %v2264 = vsub.f32 %v2142, %v2252
    %2273 = vset.pattern.permute.xlu0 0
    %2274 = vperm.xlu0 %2273, %v2257
    %v2275 = vpop.permute.xlu0 %2274
    %2276 = vset.pattern.permute.xlu0 0
    %2277 = vperm.xlu0 %2276, %v2258
    %v2278 = vpop.permute.xlu0 %2277
    %2279 = vset.pattern.permute.xlu0 0
    %2280 = vperm.xlu0 %2279, %v2259
    %v2281 = vpop.permute.xlu0 %2280
    %2282 = vset.pattern.permute.xlu0 0
    %2283 = vperm.xlu0 %2282, %v2260
    %v2284 = vpop.permute.xlu0 %2283
    %2285 = vset.pattern.permute.xlu0 0
    %2286 = vperm.xlu0 %2285, %v2261
    %v2287 = vpop.permute.xlu0 %2286
    %2288 = vset.pattern.permute.xlu0 0
    %2289 = vperm.xlu0 %2288, %v2262
    %v2290 = vpop.permute.xlu0 %2289
    %2291 = vset.pattern.permute.xlu0 0
    %2292 = vperm.xlu0 %2291, %v2263
    %v2293 = vpop.permute.xlu0 %2292
    %2294 = vset.pattern.permute.xlu0 0
    %2295 = vperm.xlu0 %2294, %v2264
    %v2296 = vpop.permute.xlu0 %2295
    %v2297 = vlaneseq
    %v2298 = vshrl.u32 %v2297, 7
    %v2299 = vsub.s32 %v1024, %v2298
    %v2300 = vrot.slane %v2275, %v2299
    %v2301 = vlaneseq
    %v2302 = vshrl.u32 %v2301, 7
    %v2303 = vsub.s32 %v2069, %v2302
    %v2304 = vrot.slane %v2278, %v2303
    %v2305 = vsel %vm2074, %v2304, %v2300
    %v2306 = vlaneseq
    %v2307 = vshrl.u32 %v2306, 7
    %v2308 = vsub.s32 %v1024, %v2307
    %v2309 = vrot.slane %v2281, %v2308
    %v2310 = vlaneseq
    %v2311 = vshrl.u32 %v2310, 7
    %v2312 = vsub.s32 %v2069, %v2311
    %v2313 = vrot.slane %v2284, %v2312
    %v2314 = vsel %vm2074, %v2313, %v2309
    %v2315 = vlaneseq
    %v2316 = vshrl.u32 %v2315, 7
    %v2317 = vsub.s32 %v1024, %v2316
    %v2318 = vrot.slane %v2287, %v2317
    %v2319 = vlaneseq
    %v2320 = vshrl.u32 %v2319, 7
    %v2321 = vsub.s32 %v2069, %v2320
    %v2322 = vrot.slane %v2290, %v2321
    %v2323 = vsel %vm2074, %v2322, %v2318
    %v2324 = vlaneseq
    %v2325 = vshrl.u32 %v2324, 7
    %v2326 = vsub.s32 %v1024, %v2325
    %v2327 = vrot.slane %v2293, %v2326
    %v2328 = vlaneseq
    %v2329 = vshrl.u32 %v2328, 7
    %v2330 = vsub.s32 %v2069, %v2329
    %v2331 = vrot.slane %v2296, %v2330
    %v2332 = vsel %vm2074, %v2331, %v2327
    %v2333 = vsel %vm2103, %v2314, %v2305
    %v2334 = vsel %vm2105, %v2323, %v2333
    %v2335 = vsel %vm2107, %v2332, %v2334
    %2337 = vst.msk [vmem:[#allocation2] sm:$0xf] %vm2110, %v2335
    // Predicated region
    $region26: #{tpu_custom_call.1} parent=1 // pred_check
      _
    $region27: #{tpu_custom_call.1} parent=1 // pred_check_branch
      %2339 = sbr.rel (0) target = $region29
    $region28: #{tpu_custom_call.1} parent=1 // pred_region
      %s2341 = ssub.s32 64, 64
      %2342 = vsyncadd [#allocation3], %s2341
      %s2344 = sshll.u32 [#allocation2], 4
      %s2345 = int_to_ptr.vmem [resolvable:$true] %s2344
      %2347 = dma.vmem_to_hbm [thread:$0]  %s2345, 64, %s6, [#allocation3]
    $region29: #{tpu_custom_call.1} parent=1 // pred_fallthru
      _
    // Predicated region
    $region30: #{tpu_custom_call.1} parent=1 // pred_check
      _
    $region31: #{tpu_custom_call.1} parent=1 // pred_check_branch
      %2349 = sbr.rel (0) target = $region33
    $region32: #{tpu_custom_call.1} parent=1 // pred_region
      %2350 = dma.done [#allocation3], 64
    $region33: #{tpu_custom_call.1} parent=1 // pred_fallthru
      _
    %2351 = vsyncpa [#allocation3], 1

</llo_original>
